<compile_context>
chip_gen: v5e
topology: v5e:2x2
jax: 0.10.0
libtpu: 0.0.40
codegen_flags: <defaults>
</compile_context>

<pallas_src>
import functools
import numpy as np
import jax
import jax.numpy as jnp
from jax.experimental import pallas as pl
from jax.experimental.pallas import tpu as pltpu


# ---------------- config (mirrors the cfg fields used by Basenet_volleyball) ----------
class Cfg:
    image_size = (32, 32)
    out_size = (8, 8)
    crop_size = (5, 5)          # K x K RoIAlign crop
    num_boxes = 4               # N
    emb_features = 8            # D: channels of the (stand-in) backbone feature map
    num_features_boxes = 128    # NFB
    num_actions = 9
    num_activities = 8
    train_dropout_prob = 0.3
    backbone = 'inv3'


# ---------------- backbone conv kernel -------------------------------------------------
def _conv_kernel(pT_ref, wT_ref, b_ref, o_ref):
    # backbone conv hot path: lane-dense output (D, rows_block).
    # bf16 operands on the MXU, f32 accumulation; bias + ReLU on the VPU.
    acc = jnp.dot(wT_ref[...], pT_ref[...], preferred_element_type=jnp.float32)
    o_ref[...] = jnp.maximum(acc + b_ref[...], 0.0)


def _pick_row_block(rows):
    # Whole problem is a few hundred KiB (well under any generation's VMEM), so use at
    # most 2 grid steps: an even 2-way split (multiple of 128) maps cleanly onto v7x's
    # 2 TensorCores; otherwise a single block (grid=(1,)) removes per-step overhead.
    half = rows // 2
    if rows % 2 == 0 and half % 128 == 0:
        return half
    return rows


def conv_backbone_pallas(patches_T, w_col_T, b_col):
    # patches_T: (kk_pad, rows) bf16 ; w_col_T: (D, kk_pad) bf16 ; b_col: (D, 1) f32
    d, kk = w_col_T.shape
    rows = patches_T.shape[1]
    blk = _pick_row_block(rows)
    grid = (rows // blk,)
    cost = pl.CostEstimate(
        flops=2 * d * kk * rows,
        transcendentals=0,
        bytes_accessed=(patches_T.size * 2 + w_col_T.size * 2 + b_col.size * 4
                        + d * rows * 4))
    return pl.pallas_call(
        _conv_kernel,
        out_shape=jax.ShapeDtypeStruct((d, rows), jnp.float32),
        grid=grid,
        in_specs=[pl.BlockSpec((kk, blk), lambda i: (0, i)),
                  pl.BlockSpec((d, kk), lambda i: (0, 0)),
                  pl.BlockSpec((d, 1), lambda i: (0, 0))],
        out_specs=pl.BlockSpec((d, blk), lambda i: (0, i)),
        compiler_params=pltpu.CompilerParams(
            dimension_semantics=("parallel",),
            vmem_limit_bytes=32 * 1024 * 1024),
        cost_estimate=cost,
    )(patches_T, w_col_T, b_col)


# ---------------- head kernel (fc_emb + pooling + fc_actions / fc_activities) ----------
def _head_kernel(T, N, x_ref, we_ref, be_ref, wa_ref, ba_ref, wc_ref, bc_ref,
                 act_ref, acty_ref):
    # x_ref: (1, T, N, kkd) bf16 for one batch element; weights resident across grid steps.
    we = we_ref[...]
    be = be_ref[...]
    acc = None
    pooled = None
    # Static unroll over T (small): each per-frame block is a clean (N, kkd) ref-indexed
    # load, so no sub-(8,128) value extracts are needed; mean-over-T / max-over-N
    # reductions accumulate directly in vregs.  Mean over T commutes with the affine fc
    # layers (dropout is identity at inference), so the tiny fcs run once per batch element.
    for t in range(T):
        h = jnp.maximum(
            jnp.dot(x_ref[0, t], we, preferred_element_type=jnp.float32) + be, 0.0)
        if t == 0:
            acc = h                                            # (N, NFB)
            pooled = jnp.max(h, axis=0, keepdims=True)          # (1, NFB)
        else:
            acc = acc + h
            pooled = pooled + jnp.max(h, axis=0, keepdims=True)
    inv_t = 1.0 / T
    hm = acc * inv_t                                            # mean over T, per box
    pm = pooled * inv_t                                         # mean over T of per-t box max
    act_ref[0] = (jnp.dot(hm, wa_ref[...], preferred_element_type=jnp.float32)
                  + ba_ref[...])                                # fc_actions   (N, A)
    acty_ref[0] = (jnp.dot(pm, wc_ref[...], preferred_element_type=jnp.float32)
                   + bc_ref[...])                               # fc_activities (1, C)


def head_pallas(B, T, N, num_actions, num_activities,
                boxes_features, w_emb, b_emb, w_act, b_act, w_acty, b_acty):
    # boxes_features: (B, T, N, kkd) bf16
    kkd = boxes_features.shape[-1]
    NFB = w_emb.shape[-1]
    kernel = functools.partial(_head_kernel, T, N)
    cost = pl.CostEstimate(
        flops=2 * (B * T * N * kkd * NFB + B * N * NFB * num_actions
                   + B * NFB * num_activities),
        transcendentals=0,
        bytes_accessed=(boxes_features.size * 2 + w_emb.size * 2 + b_emb.size * 4
                        + w_act.size * 4 + b_act.size * 4 + w_acty.size * 4
                        + b_acty.size * 4
                        + B * N * num_actions * 4 + B * num_activities * 4))
    actions, activities = pl.pallas_call(
        kernel,
        out_shape=(jax.ShapeDtypeStruct((B, N, num_actions), jnp.float32),
                   jax.ShapeDtypeStruct((B, 1, num_activities), jnp.float32)),
        grid=(B,),
        in_specs=[pl.BlockSpec((1, T, N, kkd), lambda b: (b, 0, 0, 0)),
                  pl.BlockSpec((kkd, NFB), lambda b: (0, 0)),
                  pl.BlockSpec((1, NFB), lambda b: (0, 0)),
                  pl.BlockSpec((NFB, num_actions), lambda b: (0, 0)),
                  pl.BlockSpec((1, num_actions), lambda b: (0, 0)),
                  pl.BlockSpec((NFB, num_activities), lambda b: (0, 0)),
                  pl.BlockSpec((1, num_activities), lambda b: (0, 0))],
        out_specs=(pl.BlockSpec((1, N, num_actions), lambda b: (b, 0, 0)),
                   pl.BlockSpec((1, 1, num_activities), lambda b: (b, 0, 0))),
        compiler_params=pltpu.CompilerParams(
            dimension_semantics=("parallel",),
            vmem_limit_bytes=32 * 1024 * 1024),
        cost_estimate=cost,
    )(boxes_features, w_emb, b_emb, w_act, b_act, w_acty, b_acty)
    return (actions.reshape(B * N, num_actions),
            activities.reshape(B, num_activities))


# ---------------- JAX glue (reshapes, sampling, im2col) -------------------------------
def im2col_T(x, k=3, stride=2, pad=1):
    # returns patches transposed: (C*k*k, bt*hf*wf) so the conv kernel output is lane-dense
    bt, c, h, w = x.shape
    xp = jnp.pad(x, ((0, 0), (0, 0), (pad, pad), (pad, pad)))
    hf = (h + 2 * pad - k) // stride + 1
    wf = (w + 2 * pad - k) // stride + 1
    cols = []
    for di in range(k):
        for dj in range(k):
            cols.append(xp[:, :, di:di + stride * hf:stride, dj:dj + stride * wf:stride])
    patches = jnp.stack(cols, axis=2)                            # (bt, c, k*k, hf, wf)
    patches_T = patches.transpose(1, 2, 0, 3, 4).reshape(c * k * k, bt * hf * wf)
    return patches_T, hf, wf


def resize_bilinear_align_corners(x, oh, ow):
    # F.interpolate(..., mode='bilinear', align_corners=True); resizes last two dims.
    h, w = x.shape[-2], x.shape[-1]
    if (h, w) == (oh, ow):
        return x
    ys = jnp.linspace(0.0, h - 1.0, oh)
    xs = jnp.linspace(0.0, w - 1.0, ow)
    y0 = jnp.floor(ys).astype(jnp.int32)
    y1 = jnp.minimum(y0 + 1, h - 1)
    wy = (ys - y0)[None, None, :, None]
    x0 = jnp.floor(xs).astype(jnp.int32)
    x1 = jnp.minimum(x0 + 1, w - 1)
    wx = (xs - x0)[None, None, None, :]
    top = x[:, :, y0, :] * (1.0 - wy) + x[:, :, y1, :] * wy
    return top[:, :, :, x0] * (1.0 - wx) + top[:, :, :, x1] * wx


def roi_align_crop_resize(features, boxes, box_idx, K):
    # features: (D, BT, OH, OW) — channel-major layout straight out of the conv kernel.
    # boxes: (num, 4) = (x1, y1, x2, y2) in feature-map coords
    # TODO(synk): simplified RoIAlign — one bilinear sample per output bin (crop-and-resize
    # style grid), not the multi-sample-per-bin averaging of the CUDA RoIAlign op.
    oh, ow = features.shape[-2], features.shape[-1]

    def one_box(box, idx):
        x1, y1, x2, y2 = box[0], box[1], box[2], box[3]
        ii = jnp.arange(K, dtype=jnp.float32)
        denom = float(max(K - 1, 1))
        ys = jnp.clip(y1 + (y2 - y1) * ii / denom, 0.0, oh - 1.0)
        xs = jnp.clip(x1 + (x2 - x1) * ii / denom, 0.0, ow - 1.0)
        y0 = jnp.floor(ys).astype(jnp.int32)
        y1i = jnp.minimum(y0 + 1, oh - 1)
        wy = (ys - y0)[None, :, None]
        x0 = jnp.floor(xs).astype(jnp.int32)
        x1i = jnp.minimum(x0 + 1, ow - 1)
        wx = (xs - x0)[None, None, :]
        fm = features[:, idx]                                 # (D, OH, OW)
        a = fm[:, y0, :][:, :, x0]
        b = fm[:, y0, :][:, :, x1i]
        c = fm[:, y1i, :][:, :, x0]
        e = fm[:, y1i, :][:, :, x1i]
        return (a * (1 - wy) * (1 - wx) + b * (1 - wy) * wx
                + c * wy * (1 - wx) + e * wy * wx)            # (D, K, K)

    return jax.vmap(one_box)(boxes, box_idx)                  # (num, D, K, K)


def basenet_volleyball_forward(cfg, params, images_in, boxes_in):
    B, T = images_in.shape[0], images_in.shape[1]
    H, W = cfg.image_size
    OH, OW = cfg.out_size
    N = cfg.num_boxes
    K = cfg.crop_size[0]
    D = cfg.emb_features

    images_in_flat = images_in.reshape(B * T, 3, H, W)
    boxes_in_flat = boxes_in.reshape(B * T * N, 4)
    boxes_idx_flat = jnp.repeat(jnp.arange(B * T, dtype=jnp.int32), N)

    # prep_images: x/255 - 0.5, *2
    images_in_flat = (images_in_flat / 255.0 - 0.5) * 2.0

    # TODO(synk): pretrained Inception-v3 / VGG backbone replaced by one deterministic
    # 3x3 stride-2 conv (+ReLU), computed as a lane-dense im2col matmul Pallas kernel.
    patches_T, hf, wf = im2col_T(images_in_flat, k=3, stride=2, pad=1)
    kk = patches_T.shape[0]
    kk_pad = ((kk + 31) // 32) * 32          # pad contraction 27 -> 32 (clean bf16 packing)
    patches_T = jnp.pad(patches_T, ((0, kk_pad - kk), (0, 0)))
    w_col_T = jnp.pad(params['w_conv'], ((0, kk_pad - kk), (0, 0))).T

    feat = conv_backbone_pallas(patches_T.astype(jnp.bfloat16),
                                w_col_T.astype(jnp.bfloat16),
                                params['b_conv'])                        # (D, BT*hf*wf)
    # stay in (D, BT, h, w) layout all the way to the RoI gather: no feature transpose.
    features = feat.reshape(D, B * T, hf, wf)

    # multiscale branch: interpolate each scale to (OH, OW) then cat (single scale here)
    features_multiscale = resize_bilinear_align_corners(features, OH, OW)  # (D, BT, OH, OW)

    # boxes are given normalized [0,1]; scale to feature-map coordinates
    scale = jnp.array([OW - 1, OH - 1, OW - 1, OH - 1], jnp.float32)
    boxes_fm = boxes_in_flat * scale

    # TODO(synk): the resize + RoI gather could be folded into the head kernel via
    # scalar-prefetched gather indices so boxes_features never round-trips HBM; kept as
    # fused XLA glue under jit here.
    boxes_features = roi_align_crop_resize(features_multiscale, boxes_fm, boxes_idx_flat, K)
    boxes_features = boxes_features.reshape(B, T, N, D * K * K)

    # TODO(synk): dropout_emb omitted (inference / identity).
    actions_scores, activities_scores = head_pallas(
        B, T, N, cfg.num_actions, cfg.num_activities,
        boxes_features.astype(jnp.bfloat16),
        params['w_emb'].astype(jnp.bfloat16), params['b_emb'],
        params['w_act'], params['b_act'],
        params['w_acty'], params['b_acty'])
    return actions_scores, activities_scores


# ---------------- deterministic parameter init ----------------------------------------
def init_params(cfg, key):
    D = cfg.emb_features
    K = cfg.crop_size[0]
    NFB = cfg.num_features_boxes
    kkd = K * K * D
    k1, k2, k3, k4 = jax.random.split(key, 4)

    def kaiming(k, fan_in, shape):
        # nn.init.kaiming_normal_: std = sqrt(2 / fan_in); biases zero-initialized
        return jax.random.normal(k, shape, jnp.float32) * np.sqrt(2.0 / fan_in)

    return {
        'w_conv': kaiming(k1, 27, (27, D)),             # im2col rows ordered (c, k*k)
        'b_conv': jnp.zeros((D, 1), jnp.float32),
        'w_emb': kaiming(k2, kkd, (kkd, NFB)),          # stored as (in, out)
        'b_emb': jnp.zeros((1, NFB), jnp.float32),
        'w_act': kaiming(k3, NFB, (NFB, cfg.num_actions)),
        'b_act': jnp.zeros((1, cfg.num_actions), jnp.float32),
        'w_acty': kaiming(k4, NFB, (NFB, cfg.num_activities)),
        'b_acty': jnp.zeros((1, cfg.num_activities), jnp.float32),
    }


if __name__ == "__main__":
    cfg = Cfg()
    key = jax.random.PRNGKey(0)
    kp, ki, kb1, kb2 = jax.random.split(key, 4)
    params = init_params(cfg, kp)

    B, T, N = 2, 3, cfg.num_boxes
    H, W = cfg.image_size
    images_in = jax.random.uniform(ki, (B, T, 3, H, W), jnp.float32, 0.0, 255.0)
    # normalized (x1, y1, x2, y2) boxes with x1 < x2, y1 < y2
    lo = jax.random.uniform(kb1, (B, T, N, 2), jnp.float32, 0.0, 0.5)
    ext = jax.random.uniform(kb2, (B, T, N, 2), jnp.float32, 0.2, 0.5)
    hi = jnp.clip(lo + ext, 0.0, 1.0)
    boxes_in = jnp.concatenate([lo, hi], axis=-1)

    # jit the whole forward: the glue ops (im2col, resize, RoI gathers) fuse into one
    # XLA program around the two pallas_calls instead of dozens of eager dispatches.
    forward = jax.jit(functools.partial(basenet_volleyball_forward, cfg))

    actions_scores, activities_scores = forward(params, images_in, boxes_in)
    jax.block_until_ready((actions_scores, activities_scores))
    assert actions_scores.shape == (B * N, cfg.num_actions)
    assert activities_scores.shape == (B, cfg.num_activities)
    print("KERNEL_OK")
</pallas_src>

<mosaic_0001>
module attributes {stable_mosaic.version = 11 : i64} {
  func.func @_conv_kernel(%arg0: i32, %arg1: memref<32x768xbf16, #tpu.memory_space<vmem>>, %arg2: memref<8x32xbf16, #tpu.memory_space<vmem>>, %arg3: memref<8x1xf32, #tpu.memory_space<vmem>>, %arg4: memref<8x768xf32, #tpu.memory_space<vmem>>) attributes {dimension_semantics = [#tpu.dimension_semantics<parallel>], iteration_bounds = array<i64: 2>, scalar_prefetch = 0 : i64, scratch_operands = 0 : i64, tpu.core_type = #tpu.core_type<tc>, window_params = [{transform_indices = @transform_0, window_bounds = array<i64: 32, 768>}, {pipeline_mode = #tpu.pipeline_mode<synchronous>, transform_indices = @transform_1, window_bounds = array<i64: 8, 32>}, {pipeline_mode = #tpu.pipeline_mode<synchronous>, transform_indices = @transform_2, window_bounds = array<i64: 8, 1>}, {transform_indices = @transform_3, window_bounds = array<i64: 8, 768>}]} {
    %c0 = arith.constant 0 : index
    %c0_0 = arith.constant 0 : index
    %0 = vector.load %arg2[%c0, %c0_0] : memref<8x32xbf16, #tpu.memory_space<vmem>>, vector<8x32xbf16>
    %c0_1 = arith.constant 0 : index
    %c0_2 = arith.constant 0 : index
    %1 = vector.load %arg1[%c0_1, %c0_2] : memref<32x768xbf16, #tpu.memory_space<vmem>>, vector<32x768xbf16>
    %cst = arith.constant dense<0.000000e+00> : vector<8x768xf32>
    %2 = tpu.matmul %0, %1, %cst {dimension_numbers = #tpu.dot_dimension_numbers<[1], [0], [0], [1], [0, 0, 1, 1], [], []>} : vector<8x32xbf16>, vector<32x768xbf16>, vector<8x768xf32> -> vector<8x768xf32>
    %c0_3 = arith.constant 0 : index
    %c0_4 = arith.constant 0 : index
    %3 = vector.load %arg3[%c0_3, %c0_4] : memref<8x1xf32, #tpu.memory_space<vmem>>, vector<8x1xf32>
    %4 = vector.broadcast %3 : vector<8x1xf32> to vector<8x768xf32>
    %5 = arith.addf %2, %4 : vector<8x768xf32>
    %cst_5 = arith.constant 0.000000e+00 : f32
    %6 = vector.broadcast %cst_5 : f32 to vector<8x768xf32>
    %7 = arith.maximumf %5, %6 : vector<8x768xf32>
    %c0_6 = arith.constant 0 : index
    %c0_7 = arith.constant 0 : index
    %8 = vector.load %arg4[%c0_6, %c0_7] : memref<8x768xf32, #tpu.memory_space<vmem>>, vector<8x768xf32>
    tpu.vector_store %arg4[%c0_6, %c0_7], %7 {strides = array<i32>} : memref<8x768xf32, #tpu.memory_space<vmem>>, vector<8x768xf32>,
    return
  }
  func.func @transform_0(%arg0: i32) -> (i32, i32) {
    %c0_i32 = arith.constant 0 : i32
    %c0_i32_0 = arith.constant 0 : i32
    return %c0_i32, %arg0 : i32, i32
  }
  func.func @transform_1(%arg0: i32) -> (i32, i32) {
    %c0_i32 = arith.constant 0 : i32
    %c0_i32_0 = arith.constant 0 : i32
    %c0_i32_1 = arith.constant 0 : i32
    return %c0_i32, %c0_i32_0 : i32, i32
  }
  func.func @transform_2(%arg0: i32) -> (i32, i32) {
    %c0_i32 = arith.constant 0 : i32
    %c0_i32_0 = arith.constant 0 : i32
    %c0_i32_1 = arith.constant 0 : i32
    return %c0_i32, %c0_i32_0 : i32, i32
  }
  func.func @transform_3(%arg0: i32) -> (i32, i32) {
    %c0_i32 = arith.constant 0 : i32
    %c0_i32_0 = arith.constant 0 : i32
    return %c0_i32, %arg0 : i32, i32
  }
}

module attributes {stable_mosaic.version = 11 : i64} {
  func.func @_head_kernel(%arg0: i32, %arg1: memref<1x3x4x200xbf16, #tpu.memory_space<vmem>>, %arg2: memref<200x128xbf16, #tpu.memory_space<vmem>>, %arg3: memref<1x128xf32, #tpu.memory_space<vmem>>, %arg4: memref<128x9xf32, #tpu.memory_space<vmem>>, %arg5: memref<1x9xf32, #tpu.memory_space<vmem>>, %arg6: memref<128x8xf32, #tpu.memory_space<vmem>>, %arg7: memref<1x8xf32, #tpu.memory_space<vmem>>, %arg8: memref<1x4x9xf32, #tpu.memory_space<vmem>>, %arg9: memref<1x1x8xf32, #tpu.memory_space<vmem>>) attributes {dimension_semantics = [#tpu.dimension_semantics<parallel>], iteration_bounds = array<i64: 2>, scalar_prefetch = 0 : i64, scratch_operands = 0 : i64, tpu.core_type = #tpu.core_type<tc>, window_params = [{transform_indices = @transform_0, window_bounds = array<i64: 1, 3, 4, 200>}, {pipeline_mode = #tpu.pipeline_mode<synchronous>, transform_indices = @transform_1, window_bounds = array<i64: 200, 128>}, {pipeline_mode = #tpu.pipeline_mode<synchronous>, transform_indices = @transform_2, window_bounds = array<i64: 1, 128>}, {pipeline_mode = #tpu.pipeline_mode<synchronous>, transform_indices = @transform_3, window_bounds = array<i64: 128, 9>}, {pipeline_mode = #tpu.pipeline_mode<synchronous>, transform_indices = @transform_4, window_bounds = array<i64: 1, 9>}, {pipeline_mode = #tpu.pipeline_mode<synchronous>, transform_indices = @transform_5, window_bounds = array<i64: 128, 8>}, {pipeline_mode = #tpu.pipeline_mode<synchronous>, transform_indices = @transform_6, window_bounds = array<i64: 1, 8>}, {transform_indices = @transform_7, window_bounds = array<i64: 1, 4, 9>}, {transform_indices = @transform_8, window_bounds = array<i64: 1, 1, 8>}]} {
    %c0 = arith.constant 0 : index
    %c0_0 = arith.constant 0 : index
    %0 = vector.load %arg2[%c0, %c0_0] : memref<200x128xbf16, #tpu.memory_space<vmem>>, vector<200x128xbf16>
    %c0_1 = arith.constant 0 : index
    %c0_2 = arith.constant 0 : index
    %1 = vector.load %arg3[%c0_1, %c0_2] : memref<1x128xf32, #tpu.memory_space<vmem>>, vector<1x128xf32>
    %c0_3 = arith.constant 0 : index
    %c0_4 = arith.constant 0 : index
    %c0_5 = arith.constant 0 : index
    %c0_6 = arith.constant 0 : index
    %2 = vector.load %arg1[%c0_3, %c0_4, %c0_5, %c0_6] : memref<1x3x4x200xbf16, #tpu.memory_space<vmem>>, vector<1x1x4x200xbf16>
    %3 = vector.shape_cast %2 : vector<1x1x4x200xbf16> to vector<4x200xbf16>
    %cst = arith.constant dense<0.000000e+00> : vector<4x128xf32>
    %4 = tpu.matmul %3, %0, %cst {dimension_numbers = #tpu.dot_dimension_numbers<[1], [0], [0], [1], [0, 0, 1, 1], [], []>} : vector<4x200xbf16>, vector<200x128xbf16>, vector<4x128xf32> -> vector<4x128xf32>
    %5 = vector.broadcast %1 : vector<1x128xf32> to vector<4x128xf32>
    %6 = arith.addf %4, %5 : vector<4x128xf32>
    %cst_7 = arith.constant 0.000000e+00 : f32
    %7 = vector.broadcast %cst_7 : f32 to vector<4x128xf32>
    %8 = arith.maximumf %6, %7 : vector<4x128xf32>
    %cst_8 = arith.constant dense<0xFF800000> : vector<128xf32>
    %9 = vector.multi_reduction <maximumf>, %8, %cst_8 [0] : vector<4x128xf32> to vector<128xf32>
    %10 = vector.shape_cast %9 : vector<128xf32> to vector<1x128xf32>
    %c0_9 = arith.constant 0 : index
    %c1 = arith.constant 1 : index
    %c0_10 = arith.constant 0 : index
    %c0_11 = arith.constant 0 : index
    %11 = vector.load %arg1[%c0_9, %c1, %c0_10, %c0_11] : memref<1x3x4x200xbf16, #tpu.memory_space<vmem>>, vector<1x1x4x200xbf16>
    %12 = vector.shape_cast %11 : vector<1x1x4x200xbf16> to vector<4x200xbf16>
    %cst_12 = arith.constant dense<0.000000e+00> : vector<4x128xf32>
    %13 = tpu.matmul %12, %0, %cst_12 {dimension_numbers = #tpu.dot_dimension_numbers<[1], [0], [0], [1], [0, 0, 1, 1], [], []>} : vector<4x200xbf16>, vector<200x128xbf16>, vector<4x128xf32> -> vector<4x128xf32>
    %14 = vector.broadcast %1 : vector<1x128xf32> to vector<4x128xf32>
    %15 = arith.addf %13, %14 : vector<4x128xf32>
    %cst_13 = arith.constant 0.000000e+00 : f32
    %16 = vector.broadcast %cst_13 : f32 to vector<4x128xf32>
    %17 = arith.maximumf %15, %16 : vector<4x128xf32>
    %18 = arith.addf %8, %17 : vector<4x128xf32>
    %cst_14 = arith.constant dense<0xFF800000> : vector<128xf32>
    %19 = vector.multi_reduction <maximumf>, %17, %cst_14 [0] : vector<4x128xf32> to vector<128xf32>
    %20 = vector.shape_cast %19 : vector<128xf32> to vector<1x128xf32>
    %21 = arith.addf %10, %20 : vector<1x128xf32>
    %c0_15 = arith.constant 0 : index
    %c2 = arith.constant 2 : index
    %c0_16 = arith.constant 0 : index
    %c0_17 = arith.constant 0 : index
    %22 = vector.load %arg1[%c0_15, %c2, %c0_16, %c0_17] : memref<1x3x4x200xbf16, #tpu.memory_space<vmem>>, vector<1x1x4x200xbf16>
    %23 = vector.shape_cast %22 : vector<1x1x4x200xbf16> to vector<4x200xbf16>
    %cst_18 = arith.constant dense<0.000000e+00> : vector<4x128xf32>
    %24 = tpu.matmul %23, %0, %cst_18 {dimension_numbers = #tpu.dot_dimension_numbers<[1], [0], [0], [1], [0, 0, 1, 1], [], []>} : vector<4x200xbf16>, vector<200x128xbf16>, vector<4x128xf32> -> vector<4x128xf32>
    %25 = vector.broadcast %1 : vector<1x128xf32> to vector<4x128xf32>
    %26 = arith.addf %24, %25 : vector<4x128xf32>
    %cst_19 = arith.constant 0.000000e+00 : f32
    %27 = vector.broadcast %cst_19 : f32 to vector<4x128xf32>
    %28 = arith.maximumf %26, %27 : vector<4x128xf32>
    %29 = arith.addf %18, %28 : vector<4x128xf32>
    %cst_20 = arith.constant dense<0xFF800000> : vector<128xf32>
    %30 = vector.multi_reduction <maximumf>, %28, %cst_20 [0] : vector<4x128xf32> to vector<128xf32>
    %31 = vector.shape_cast %30 : vector<128xf32> to vector<1x128xf32>
    %32 = arith.addf %21, %31 : vector<1x128xf32>
    %cst_21 = arith.constant 0.333333343 : f32
    %33 = vector.broadcast %cst_21 : f32 to vector<4x128xf32>
    %34 = arith.mulf %29, %33 : vector<4x128xf32>
    %cst_22 = arith.constant 0.333333343 : f32
    %35 = vector.broadcast %cst_22 : f32 to vector<1x128xf32>
    %36 = arith.mulf %32, %35 : vector<1x128xf32>
    %c0_23 = arith.constant 0 : index
    %c0_24 = arith.constant 0 : index
    %37 = vector.load %arg4[%c0_23, %c0_24] : memref<128x9xf32, #tpu.memory_space<vmem>>, vector<128x9xf32>
    %cst_25 = arith.constant dense<0.000000e+00> : vector<4x9xf32>
    %38 = tpu.matmul %34, %37, %cst_25 {dimension_numbers = #tpu.dot_dimension_numbers<[1], [0], [0], [1], [0, 0, 1, 1], [], []>} : vector<4x128xf32>, vector<128x9xf32>, vector<4x9xf32> -> vector<4x9xf32>
    %c0_26 = arith.constant 0 : index
    %c0_27 = arith.constant 0 : index
    %39 = vector.load %arg5[%c0_26, %c0_27] : memref<1x9xf32, #tpu.memory_space<vmem>>, vector<1x9xf32>
    %40 = vector.broadcast %39 : vector<1x9xf32> to vector<4x9xf32>
    %41 = arith.addf %38, %40 : vector<4x9xf32>
    %c0_28 = arith.constant 0 : index
    %c0_29 = arith.constant 0 : index
    %c0_30 = arith.constant 0 : index
    %42 = vector.load %arg8[%c0_28, %c0_29, %c0_30] : memref<1x4x9xf32, #tpu.memory_space<vmem>>, vector<1x4x9xf32>
    %43 = vector.shape_cast %42 : vector<1x4x9xf32> to vector<4x9xf32>
    %44 = vector.shape_cast %41 : vector<4x9xf32> to vector<1x4x9xf32>
    tpu.vector_store %arg8[%c0_28, %c0_29, %c0_30], %44 {strides = array<i32>} : memref<1x4x9xf32, #tpu.memory_space<vmem>>, vector<1x4x9xf32>,
    %c0_31 = arith.constant 0 : index
    %c0_32 = arith.constant 0 : index
    %45 = vector.load %arg6[%c0_31, %c0_32] : memref<128x8xf32, #tpu.memory_space<vmem>>, vector<128x8xf32>
    %cst_33 = arith.constant dense<0.000000e+00> : vector<1x8xf32>
    %46 = tpu.matmul %36, %45, %cst_33 {dimension_numbers = #tpu.dot_dimension_numbers<[1], [0], [0], [1], [0, 0, 1, 1], [], []>} : vector<1x128xf32>, vector<128x8xf32>, vector<1x8xf32> -> vector<1x8xf32>
    %c0_34 = arith.constant 0 : index
    %c0_35 = arith.constant 0 : index
    %47 = vector.load %arg7[%c0_34, %c0_35] : memref<1x8xf32, #tpu.memory_space<vmem>>, vector<1x8xf32>
    %48 = arith.addf %46, %47 : vector<1x8xf32>
    %c0_36 = arith.constant 0 : index
    %c0_37 = arith.constant 0 : index
    %c0_38 = arith.constant 0 : index
    %49 = vector.load %arg9[%c0_36, %c0_37, %c0_38] : memref<1x1x8xf32, #tpu.memory_space<vmem>>, vector<1x1x8xf32>
    %50 = vector.shape_cast %49 : vector<1x1x8xf32> to vector<1x8xf32>
    %51 = vector.shape_cast %48 : vector<1x8xf32> to vector<1x1x8xf32>
    tpu.vector_store %arg9[%c0_36, %c0_37, %c0_38], %51 {strides = array<i32>} : memref<1x1x8xf32, #tpu.memory_space<vmem>>, vector<1x1x8xf32>,
    return
  }
  func.func @transform_0(%arg0: i32) -> (i32, i32, i32, i32) {
    %c0_i32 = arith.constant 0 : i32
    %c0_i32_0 = arith.constant 0 : i32
    %c0_i32_1 = arith.constant 0 : i32
    %c0_i32_2 = arith.constant 0 : i32
    return %arg0, %c0_i32, %c0_i32_0, %c0_i32_1 : i32, i32, i32, i32
  }
  func.func @transform_1(%arg0: i32) -> (i32, i32) {
    %c0_i32 = arith.constant 0 : i32
    %c0_i32_0 = arith.constant 0 : i32
    %c0_i32_1 = arith.constant 0 : i32
    return %c0_i32, %c0_i32_0 : i32, i32
  }
  func.func @transform_2(%arg0: i32) -> (i32, i32) {
    %c0_i32 = arith.constant 0 : i32
    %c0_i32_0 = arith.constant 0 : i32
    %c0_i32_1 = arith.constant 0 : i32
    return %c0_i32, %c0_i32_0 : i32, i32
  }
  func.func @transform_3(%arg0: i32) -> (i32, i32) {
    %c0_i32 = arith.constant 0 : i32
    %c0_i32_0 = arith.constant 0 : i32
    %c0_i32_1 = arith.constant 0 : i32
    return %c0_i32, %c0_i32_0 : i32, i32
  }
  func.func @transform_4(%arg0: i32) -> (i32, i32) {
    %c0_i32 = arith.constant 0 : i32
    %c0_i32_0 = arith.constant 0 : i32
    %c0_i32_1 = arith.constant 0 : i32
    return %c0_i32, %c0_i32_0 : i32, i32
  }
  func.func @transform_5(%arg0: i32) -> (i32, i32) {
    %c0_i32 = arith.constant 0 : i32
    %c0_i32_0 = arith.constant 0 : i32
    %c0_i32_1 = arith.constant 0 : i32
    return %c0_i32, %c0_i32_0 : i32, i32
  }
  func.func @transform_6(%arg0: i32) -> (i32, i32) {
    %c0_i32 = arith.constant 0 : i32
    %c0_i32_0 = arith.constant 0 : i32
    %c0_i32_1 = arith.constant 0 : i32
    return %c0_i32, %c0_i32_0 : i32, i32
  }
  func.func @transform_7(%arg0: i32) -> (i32, i32, i32) {
    %c0_i32 = arith.constant 0 : i32
    %c0_i32_0 = arith.constant 0 : i32
    %c0_i32_1 = arith.constant 0 : i32
    return %arg0, %c0_i32, %c0_i32_0 : i32, i32, i32
  }
  func.func @transform_8(%arg0: i32) -> (i32, i32, i32) {
    %c0_i32 = arith.constant 0 : i32
    %c0_i32_0 = arith.constant 0 : i32
    %c0_i32_1 = arith.constant 0 : i32
    return %arg0, %c0_i32, %c0_i32_0 : i32, i32, i32
  }
}

</mosaic_0001>

<llo_original>
// kernel: basenet_volleyball_forward.2
$region0: #{basenet_volleyball_forward.2}
  #allocation0 [shape = 'u32[]', space=smem, size = 0x4, offset = 0x4, fixed_abs, tag = 'smem constant byte address 0x4 - core index']
  #allocation1 [shape = 'u32[72,128]{1,0:T(1,128)}', space=vmem, size = 0x9000, scoped, tag = 'internal scratch']
  %s0 = inlined_call_operand.vmem [shape: bf16[32,1536], index: 0, kind: input, shape index: {}]
  %s1 = inlined_call_operand.vmem [shape: bf16[8,32], index: 1, kind: input, shape index: {}]
  %s2 = inlined_call_operand.vmem [shape: f32[8,1], index: 2, kind: input, shape index: {}]
  %s3 = inlined_call_operand.vmem [shape: f32[8,1536], index: 3, kind: output, shape index: {}]
  %s4 = sld [smem:[#allocation0]]
  $region68: #{basenet_volleyball_forward.2} parent=0
    _
  %s6 = ssub.s32 1, %s4
  %s7 = scalar_select 0, %s6, %s4
  $region1: #{basenet_volleyball_forward.2} parent=0
    #allocation2 [shape = 'u8[98304]{0}', space=vmem, size = 0x18000, scoped, tag = 'input window, operand 0']
    loop: start=0, step=1, limit=4
    $region2: #{basenet_volleyball_forward.2} parent=1 // loop_pre_header
      _
    $region3: #{basenet_volleyball_forward.2} parent=1 // loop_header
      %s9 = sphi 0, %s13
      %p10 = scmp.ge.s32.totalorder %s9, 4
      %s19 = sphi 0, %s21
      %s22 = sphi 0, %s19
      %s23 = sphi 0, %s22
      %s39 = sphi 0, %s23
      %s43 = sphi 0, %s43
      %s45 = sphi 0, %s43
      %s46 = sphi 0, %s45
      %s60 = sphi 0, %s46
      %s64 = sphi 0, %s64
      %s66 = sphi 0, %s64
      %s67 = sphi 0, %s66
      %s81 = sphi 0, %s67
      %s87 = sphi 0, %s89
      %s90 = sphi 0, %s87
      %s91 = sphi 0, %s90
      %s107 = sphi 0, %s91
    $region4: #{basenet_volleyball_forward.2} parent=1 // loop_header_branch
      %12 = sbr.rel (%p10) target = $region8
    $region5: #{basenet_volleyball_forward.2} parent=1 // loop_body
      %s14 = ssub.s32 %s9, 1
      %s15 = ssub.s32 %s9, 2
      %s16 = sadd.s32 %s9, 1
      %s17 = ssub.s32 %s9, %s16
      %p18 = scmp.eq.s32.totalorder %s17, 0
      %s20 = sadd.s32 %s19, 1
      %s21 = scalar_select %p18, %s19, %s20
      %p24 = pneg %p18
      %p25 = scmp.eq.s32.totalorder %s9, 1
      %p26 = por %p24, %p25
      %p27 = scmp.ne.s32.totalorder %s19, %s22
      %p28 = scmp.eq.s32.totalorder %s9, 0
      %p29 = por %p27, %p28
      %p30 = scmp.ne.s32.totalorder %s19, %s22
      %p31 = scmp.eq.s32.totalorder %s14, 1
      %p32 = por %p30, %p31
      %p33 = scmp.ne.s32.totalorder %s22, %s23
      %p34 = scmp.eq.s32.totalorder %s14, 0
      %p35 = por %p33, %p34
      %p36 = scmp.ne.s32.totalorder %s22, %s23
      %p37 = scmp.eq.s32.totalorder %s15, 1
      %p38 = por %p36, %p37
      %p40 = scmp.ne.s32.totalorder %s23, %s39
      %p41 = scmp.eq.s32.totalorder %s15, 0
      %p42 = por %p40, %p41
      %s44 = sadd.s32 %s43, 1
      %p47 = scmp.eq.s32.totalorder %s9, 1
      %p48 = scmp.ne.s32.totalorder %s43, %s45
      %p49 = scmp.eq.s32.totalorder %s9, 0
      %p50 = por %p48, %p49
      %p51 = scmp.ne.s32.totalorder %s43, %s45
      %p52 = scmp.eq.s32.totalorder %s14, 1
      %p53 = por %p51, %p52
      %p54 = scmp.ne.s32.totalorder %s45, %s46
      %p55 = scmp.eq.s32.totalorder %s14, 0
      %p56 = por %p54, %p55
      %p57 = scmp.ne.s32.totalorder %s45, %s46
      %p58 = scmp.eq.s32.totalorder %s15, 1
      %p59 = por %p57, %p58
      %p61 = scmp.ne.s32.totalorder %s46, %s60
      %p62 = scmp.eq.s32.totalorder %s15, 0
      %p63 = por %p61, %p62
      %s65 = sadd.s32 %s64, 1
      %p68 = scmp.eq.s32.totalorder %s9, 1
      %p69 = scmp.ne.s32.totalorder %s64, %s66
      %p70 = scmp.eq.s32.totalorder %s9, 0
      %p71 = por %p69, %p70
      %p72 = scmp.ne.s32.totalorder %s64, %s66
      %p73 = scmp.eq.s32.totalorder %s14, 1
      %p74 = por %p72, %p73
      %p75 = scmp.ne.s32.totalorder %s66, %s67
      %p76 = scmp.eq.s32.totalorder %s14, 0
      %p77 = por %p75, %p76
      %p78 = scmp.ne.s32.totalorder %s66, %s67
      %p79 = scmp.eq.s32.totalorder %s15, 1
      %p80 = por %p78, %p79
      %p82 = scmp.ne.s32.totalorder %s67, %s81
      %p83 = scmp.eq.s32.totalorder %s15, 0
      %p84 = por %p82, %p83
      %s85 = ssub.s32 %s9, %s16
      %p86 = scmp.eq.s32.totalorder %s85, 0
      %s88 = sadd.s32 %s87, 1
      %s89 = scalar_select %p86, %s87, %s88
      %p92 = pneg %p86
      %p93 = scmp.eq.s32.totalorder %s9, 1
      %p94 = por %p92, %p93
      %p95 = scmp.ne.s32.totalorder %s87, %s90
      %p96 = scmp.eq.s32.totalorder %s9, 0
      %p97 = por %p95, %p96
      %p98 = scmp.ne.s32.totalorder %s87, %s90
      %p99 = scmp.eq.s32.totalorder %s14, 1
      %p100 = por %p98, %p99
      %p101 = scmp.ne.s32.totalorder %s90, %s91
      %p102 = scmp.eq.s32.totalorder %s14, 0
      %p103 = por %p101, %p102
      %p104 = scmp.ne.s32.totalorder %s90, %s91
      %p105 = scmp.eq.s32.totalorder %s15, 1
      %p106 = por %p104, %p105
      %p108 = scmp.ne.s32.totalorder %s91, %s107
      %p109 = scmp.eq.s32.totalorder %s15, 0
      %p110 = por %p108, %p109
      %p111 = scmp.le.s32.totalorder 1, %s9
      %p112 = scmp.lt.s32.totalorder %s9, 3
      %p113 = pnand %p111, %p112
      %p114 = pneg %p113
      // Predicated region
      $region9: #{basenet_volleyball_forward.2} parent=5 // pred_check
        _
      $region10: #{basenet_volleyball_forward.2} parent=5 // pred_check_branch
        %116 = sbr.rel (%p113) target = $region12
      $region11: #{basenet_volleyball_forward.2} parent=5 // pred_region
        %s117 = ssub.s32 %s9, 1
        // Predicated region
        $region13: #{basenet_volleyball_forward.2} parent=11 // pred_check
          %p118 = pneg %p56
        $region14: #{basenet_volleyball_forward.2} parent=11 // pred_check_branch
          %120 = sbr.rel (%p118) target = $region16
        $region15: #{basenet_volleyball_forward.2} parent=11 // pred_region
          _
        $region16: #{basenet_volleyball_forward.2} parent=11 // pred_fallthru
          _
        // Predicated region
        $region17: #{basenet_volleyball_forward.2} parent=11 // pred_check
          %p121 = pneg %p77
        $region18: #{basenet_volleyball_forward.2} parent=11 // pred_check_branch
          %123 = sbr.rel (%p121) target = $region20
        $region19: #{basenet_volleyball_forward.2} parent=11 // pred_region
          _
        $region20: #{basenet_volleyball_forward.2} parent=11 // pred_fallthru
          _
      $region12: #{basenet_volleyball_forward.2} parent=5 // pred_fallthru
        _
      %p124 = scmp.lt.s32.totalorder %s9, 2
      // Predicated region
      $region21: #{basenet_volleyball_forward.2} parent=5 // pred_check
        %p125 = pneg %p124
      $region22: #{basenet_volleyball_forward.2} parent=5 // pred_check_branch
        %127 = sbr.rel (%p125) target = $region24
      $region23: #{basenet_volleyball_forward.2} parent=5 // pred_region
        // Predicated region
        $region25: #{basenet_volleyball_forward.2} parent=23 // pred_check
          %p128 = pneg %p29
        $region26: #{basenet_volleyball_forward.2} parent=23 // pred_check_branch
          %130 = sbr.rel (%p128) target = $region28
        $region27: #{basenet_volleyball_forward.2} parent=23 // pred_region
          %s131 = sand.u32 %s19, 1
          %s132 = sand.u32 %s19, 1
          %s133 = smul.addr %s132, 96
          %s134 = scalar_lea.vmem [#allocation2], %s133
          %s135 = smul.u32 6, %s9
          %s136 = smul.addr %s135, 4
          %s137 = scalar_lea.vmem %s0, %s136
          // Predicated region
          $region29: #{basenet_volleyball_forward.2} parent=27 // pred_check
            _
          $region30: #{basenet_volleyball_forward.2} parent=27 // pred_check_branch
            %139 = sbr.rel (0) target = $region32
          $region31: #{basenet_volleyball_forward.2} parent=27 // pred_region
            // Predicated region
            $region33: #{basenet_volleyball_forward.2} parent=31 // pred_check
              _
            $region34: #{basenet_volleyball_forward.2} parent=31 // pred_check_branch
              %141 = sbr.rel (0) target = $region36
            $region35: #{basenet_volleyball_forward.2} parent=31 // pred_region
              loop: start=0, step=1, limit=1
              $region37: #{basenet_volleyball_forward.2} parent=35 // loop_pre_header
                _
              $region38: #{basenet_volleyball_forward.2} parent=35 // loop_header
                %s143 = sphi 0, %s147
                %p144 = scmp.ge.s32.totalorder %s143, 1
                %s148 = sphi %s137, %s137
                %s149 = sphi %s134, %s134
              $region39: #{basenet_volleyball_forward.2} parent=35 // loop_header_branch
                %146 = sbr.rel (%p144) target = $region43
              $region40: #{basenet_volleyball_forward.2} parent=35 // loop_body
                %v150 = vld [vmem:[%s148] sm:$0xff]
                %151 = vst [vmem:[%s149] sm:$0xff] %v150
                %v152 = vld [vmem:[%s148 + $0x8] sm:$0xff]
                %153 = vst [vmem:[%s149 + $0x8] sm:$0xff] %v152
                %v154 = vld [vmem:[%s148 + $0x10] sm:$0xff]
                %155 = vst [vmem:[%s149 + $0x10] sm:$0xff] %v154
                %v156 = vld [vmem:[%s148 + $0x30] sm:$0xff]
                %157 = vst [vmem:[%s149 + $0x18] sm:$0xff] %v156
                %v158 = vld [vmem:[%s148 + $0x38] sm:$0xff]
                %159 = vst [vmem:[%s149 + $0x20] sm:$0xff] %v158
                %v160 = vld [vmem:[%s148 + $0x40] sm:$0xff]
                %161 = vst [vmem:[%s149 + $0x28] sm:$0xff] %v160
                %v162 = vld [vmem:[%s148 + $0x60] sm:$0xff]
                %163 = vst [vmem:[%s149 + $0x30] sm:$0xff] %v162
                %v164 = vld [vmem:[%s148 + $0x68] sm:$0xff]
                %165 = vst [vmem:[%s149 + $0x38] sm:$0xff] %v164
                %v166 = vld [vmem:[%s148 + $0x70] sm:$0xff]
                %167 = vst [vmem:[%s149 + $0x40] sm:$0xff] %v166
                %v168 = vld [vmem:[%s148 + $0x90] sm:$0xff]
                %169 = vst [vmem:[%s149 + $0x48] sm:$0xff] %v168
                %v170 = vld [vmem:[%s148 + $0x98] sm:$0xff]
                %171 = vst [vmem:[%s149 + $0x50] sm:$0xff] %v170
                %v172 = vld [vmem:[%s148 + $0xa0] sm:$0xff]
                %173 = vst [vmem:[%s149 + $0x58] sm:$0xff] %v172
              $region41: #{basenet_volleyball_forward.2} parent=35 // loop_footer
                %s147 = sadd.s32 1, %s143
              $region42: #{basenet_volleyball_forward.2} parent=35 // loop_footer_branch
                %142 = sbr.rel target = $region38
              $region43: #{basenet_volleyball_forward.2} parent=35 // loop_exit
                _
            $region36: #{basenet_volleyball_forward.2} parent=31 // pred_fallthru
              _
            // Predicated region
            $region44: #{basenet_volleyball_forward.2} parent=31 // pred_check
              _
            $region45: #{basenet_volleyball_forward.2} parent=31 // pred_check_branch
              %175 = sbr.rel target = $region47
            $region46: #{basenet_volleyball_forward.2} parent=31 // pred_region
              _
            $region47: #{basenet_volleyball_forward.2} parent=31 // pred_fallthru
              _
          $region32: #{basenet_volleyball_forward.2} parent=27 // pred_fallthru
            _
          %176 = vnop
        $region28: #{basenet_volleyball_forward.2} parent=23 // pred_fallthru
          _
      $region24: #{basenet_volleyball_forward.2} parent=5 // pred_fallthru
        _
      %p177 = scmp.le.s32.totalorder 1, %s9
      %p178 = scmp.lt.s32.totalorder %s9, 3
      %p179 = pnand %p177, %p178
      %p180 = pneg %p179
      // Predicated region
      $region48: #{basenet_volleyball_forward.2} parent=5 // pred_check
        _
      $region49: #{basenet_volleyball_forward.2} parent=5 // pred_check_branch
        %182 = sbr.rel (%p179) target = $region51
      $region50: #{basenet_volleyball_forward.2} parent=5 // pred_region
        %s183 = ssub.s32 %s9, 1
        %s184 = sand.u32 %s22, 1
        %s185 = sand.u32 %s22, 1
        %s186 = smul.addr %s185, 96
        %s187 = scalar_lea.vmem [#allocation2], %s186
        // Predicated region
        $region52: #{basenet_volleyball_forward.2} parent=50 // pred_check
          %p188 = pneg %p35
        $region53: #{basenet_volleyball_forward.2} parent=50 // pred_check_branch
          %190 = sbr.rel (%p188) target = $region55
        $region54: #{basenet_volleyball_forward.2} parent=50 // pred_region
          _
        $region55: #{basenet_volleyball_forward.2} parent=50 // pred_fallthru
          _
        %s191 = sand.u32 %s22, 1
        %s192 = sand.u32 %s22, 1
        %s193 = smul.addr %s192, 96
        %s194 = scalar_lea.vmem [#allocation2], %s193
        %p195 = pneg %p35
        %p196 = pneg %p32
        %p197 = pneg %p56
        %p198 = pneg %p53
        %p199 = pneg %p77
        %p200 = pneg %p74
        %p201 = pneg %p103
        %p202 = pneg %p100
        %s203 = smul.u32 6, %s14
        %p204 = scmp.lt.s32.totalorder %s203, 11
        %s205 = scalar_select %p204, %s203, 11
        %s206 = smul.addr %s205, 8
        %s207 = scalar_lea.vmem %s3, %s206
        %s208 = smul.u32 6, %s14
        %s209 = smul.u32 6, %s14
        %p210 = scmp.lt.s32.totalorder %s209, 11
        %s211 = scalar_select %p210, %s209, 11
        %s212 = smul.addr %s211, 8
        %s213 = scalar_lea.vmem %s3, %s212
        %s214 = smul.u32 6, %s14
        %v216 = vld [vmem:[%s1] sm:$0xf]
        %v217 = vld [vmem:[%s187] sm:$0xff]
        %v218 = vld [vmem:[%s187 + $0x8] sm:$0xff]
        %v219 = vld [vmem:[%s187 + $0x10] sm:$0xff]
        %v220 = vld [vmem:[%s187 + $0x18] sm:$0xff]
        %v221 = vld [vmem:[%s187 + $0x20] sm:$0xff]
        %v222 = vld [vmem:[%s187 + $0x28] sm:$0xff]
        %v223 = vld [vmem:[%s187 + $0x30] sm:$0xff]
        %v224 = vld [vmem:[%s187 + $0x38] sm:$0xff]
        %v225 = vld [vmem:[%s187 + $0x40] sm:$0xff]
        %v226 = vld [vmem:[%s187 + $0x48] sm:$0xff]
        %v227 = vld [vmem:[%s187 + $0x50] sm:$0xff]
        %v228 = vld [vmem:[%s187 + $0x58] sm:$0xff]
        %v229 = vld [vmem:[%s2] sm:$0xff]
        %231 = vset.pattern.permute.xlu0 0
        %232 = vperm.xlu0 %231, %v229
        %v233 = vpop.permute.xlu0 %232
        %v247 = vunpack.c.l.b16 %v217
        %v248 = vunpack.c.h.b16 %v217
        %v249 = vunpack.c.l.b16 %v218
        %v250 = vunpack.c.h.b16 %v218
        %v251 = vunpack.c.l.b16 %v219
        %v252 = vunpack.c.h.b16 %v219
        %v253 = vunpack.c.l.b16 %v220
        %v254 = vunpack.c.h.b16 %v220
        %v255 = vunpack.c.l.b16 %v221
        %v256 = vunpack.c.h.b16 %v221
        %v257 = vunpack.c.l.b16 %v222
        %v258 = vunpack.c.h.b16 %v222
        %v259 = vunpack.c.l.b16 %v223
        %v260 = vunpack.c.h.b16 %v223
        %v261 = vunpack.c.l.b16 %v224
        %v262 = vunpack.c.h.b16 %v224
        %v263 = vunpack.c.l.b16 %v225
        %v264 = vunpack.c.h.b16 %v225
        %v265 = vunpack.c.l.b16 %v226
        %v266 = vunpack.c.h.b16 %v226
        %v267 = vunpack.c.l.b16 %v227
        %v268 = vunpack.c.h.b16 %v227
        %v269 = vunpack.c.l.b16 %v228
        %v270 = vunpack.c.h.b16 %v228
        %v271 = vpack.c.b16 %v253, %v247
        %v272 = vpack.c.b16 %v254, %v248
        %v273 = vpack.c.b16 %v255, %v249
        %v274 = vpack.c.b16 %v256, %v250
        %v275 = vpack.c.b16 %v257, %v251
        %v276 = vpack.c.b16 %v258, %v252
        %v277 = vpack.c.b16 %v265, %v259
        %v278 = vpack.c.b16 %v266, %v260
        %v279 = vpack.c.b16 %v267, %v261
        %v280 = vpack.c.b16 %v268, %v262
        %v281 = vpack.c.b16 %v269, %v263
        %v282 = vpack.c.b16 %v270, %v264
        %vm295 = vcmask 261120
        %v297 = vsel %vm295, %v216, 0
        %299 = vmatpush.bf16.msra.mxu0 0
        %300 = vmatpush.bf16.msra.mxu0 0
        %301 = vmatpush.bf16.msra.mxu0 0
        %302 = vmatpush.bf16.msra.mxu0 0
        %303 = vmatpush.bf16.msra.mxu0 0
        %304 = vmatpush.bf16.msra.mxu0 0
        %305 = vmatpush.bf16.msra.mxu0 %v277
        %306 = vmatpush.bf16.msra.mxu0 %v271
        %307 = vmatmul.bf16.gmra.mxu0 %v297
        %v308 = vpop.f32.mrf.mxu0
        %v309 = vadd.f32 %v233, %v308
        %v310 = vpop.f32.mrf.mxu0
        %311 = vdwg.mxu0
        %312 = vmatpush.bf16.msra.mxu0 0
        %313 = vmatpush.bf16.msra.mxu0 0
        %314 = vmatpush.bf16.msra.mxu0 0
        %315 = vmatpush.bf16.msra.mxu0 0
        %316 = vmatpush.bf16.msra.mxu0 0
        %317 = vmatpush.bf16.msra.mxu0 0
        %318 = vmatpush.bf16.msra.mxu0 %v278
        %319 = vmatpush.bf16.msra.mxu0 %v272
        %320 = vmatmul.bf16.gmra.mxu0 %v297
        %v321 = vpop.f32.mrf.mxu0
        %v322 = vadd.f32 %v233, %v321
        %v323 = vpop.f32.mrf.mxu0
        %324 = vdwg.mxu0
        %325 = vmatpush.bf16.msra.mxu0 0
        %326 = vmatpush.bf16.msra.mxu0 0
        %327 = vmatpush.bf16.msra.mxu0 0
        %328 = vmatpush.bf16.msra.mxu0 0
        %329 = vmatpush.bf16.msra.mxu0 0
        %330 = vmatpush.bf16.msra.mxu0 0
        %331 = vmatpush.bf16.msra.mxu0 %v279
        %332 = vmatpush.bf16.msra.mxu0 %v273
        %333 = vmatmul.bf16.gmra.mxu0 %v297
        %v334 = vpop.f32.mrf.mxu0
        %v335 = vadd.f32 %v233, %v334
        %v336 = vpop.f32.mrf.mxu0
        %337 = vdwg.mxu0
        %338 = vmatpush.bf16.msra.mxu0 0
        %339 = vmatpush.bf16.msra.mxu0 0
        %340 = vmatpush.bf16.msra.mxu0 0
        %341 = vmatpush.bf16.msra.mxu0 0
        %342 = vmatpush.bf16.msra.mxu0 0
        %343 = vmatpush.bf16.msra.mxu0 0
        %344 = vmatpush.bf16.msra.mxu0 %v280
        %345 = vmatpush.bf16.msra.mxu0 %v274
        %346 = vmatmul.bf16.gmra.mxu0 %v297
        %v347 = vpop.f32.mrf.mxu0
        %v348 = vadd.f32 %v233, %v347
        %v349 = vpop.f32.mrf.mxu0
        %350 = vdwg.mxu0
        %351 = vmatpush.bf16.msra.mxu0 0
        %352 = vmatpush.bf16.msra.mxu0 0
        %353 = vmatpush.bf16.msra.mxu0 0
        %354 = vmatpush.bf16.msra.mxu0 0
        %355 = vmatpush.bf16.msra.mxu0 0
        %356 = vmatpush.bf16.msra.mxu0 0
        %357 = vmatpush.bf16.msra.mxu0 %v281
        %358 = vmatpush.bf16.msra.mxu0 %v275
        %359 = vmatmul.bf16.gmra.mxu0 %v297
        %v360 = vpop.f32.mrf.mxu0
        %v361 = vadd.f32 %v233, %v360
        %v362 = vpop.f32.mrf.mxu0
        %363 = vdwg.mxu0
        %364 = vmatpush.bf16.msra.mxu0 0
        %365 = vmatpush.bf16.msra.mxu0 0
        %366 = vmatpush.bf16.msra.mxu0 0
        %367 = vmatpush.bf16.msra.mxu0 0
        %368 = vmatpush.bf16.msra.mxu0 0
        %369 = vmatpush.bf16.msra.mxu0 0
        %370 = vmatpush.bf16.msra.mxu0 %v282
        %371 = vmatpush.bf16.msra.mxu0 %v276
        %372 = vmatmul.bf16.gmra.mxu0 %v297
        %v373 = vpop.f32.mrf.mxu0
        %v374 = vadd.f32 %v233, %v373
        %v375 = vpop.f32.mrf.mxu0
        %376 = vdwg.mxu0
        %v377 = vmax.f32 %v309, 0.0
        %v378 = vmax.f32 %v322, 0.0
        %v379 = vmax.f32 %v335, 0.0
        %v380 = vmax.f32 %v348, 0.0
        %v381 = vmax.f32 %v361, 0.0
        %v382 = vmax.f32 %v374, 0.0
        %383 = vst [vmem:[%s213] sm:$0xff] %v377
        %384 = vst [vmem:[%s213 + $0x8] sm:$0xff] %v378
        %385 = vst [vmem:[%s213 + $0x10] sm:$0xff] %v379
        %386 = vst [vmem:[%s213 + $0x18] sm:$0xff] %v380
        %387 = vst [vmem:[%s213 + $0x20] sm:$0xff] %v381
        %388 = vst [vmem:[%s213 + $0x28] sm:$0xff] %v382
        %s389 = smul.u32 6, %s14
        %p390 = scmp.lt.s32.totalorder %s389, 11
        %s391 = scalar_select %p390, %s389, 11
        %s392 = smul.addr %s391, 8
        %s393 = scalar_lea.vmem %s3, %s392
        // Predicated region
        $region56: #{basenet_volleyball_forward.2} parent=50 // pred_check
          %p394 = pneg %p100
        $region57: #{basenet_volleyball_forward.2} parent=50 // pred_check_branch
          %396 = sbr.rel (%p394) target = $region59
        $region58: #{basenet_volleyball_forward.2} parent=50 // pred_region
          %s397 = smul.u32 6, %s14
        $region59: #{basenet_volleyball_forward.2} parent=50 // pred_fallthru
          _
      $region51: #{basenet_volleyball_forward.2} parent=5 // pred_fallthru
        _
      %p398 = scmp.le.s32.totalorder 2, %s9
      // Predicated region
      $region60: #{basenet_volleyball_forward.2} parent=5 // pred_check
        %p399 = pneg %p398
      $region61: #{basenet_volleyball_forward.2} parent=5 // pred_check_branch
        %401 = sbr.rel (%p399) target = $region63
      $region62: #{basenet_volleyball_forward.2} parent=5 // pred_region
        %s402 = ssub.s32 %s9, 2
        // Predicated region
        $region64: #{basenet_volleyball_forward.2} parent=62 // pred_check
          %p403 = pneg %p106
        $region65: #{basenet_volleyball_forward.2} parent=62 // pred_check_branch
          %405 = sbr.rel (%p403) target = $region67
        $region66: #{basenet_volleyball_forward.2} parent=62 // pred_region
          %s406 = smul.u32 6, %s15
          %p407 = scmp.lt.s32.totalorder %s406, 11
          %s408 = scalar_select %p407, %s406, 11
          %s409 = smul.addr %s408, 8
          %s410 = scalar_lea.vmem %s3, %s409
        $region67: #{basenet_volleyball_forward.2} parent=62 // pred_fallthru
          _
      $region63: #{basenet_volleyball_forward.2} parent=5 // pred_fallthru
        _
    $region6: #{basenet_volleyball_forward.2} parent=1 // loop_footer
      %s13 = sadd.s32 1, %s9
    $region7: #{basenet_volleyball_forward.2} parent=1 // loop_footer_branch
      %8 = sbr.rel target = $region3
    $region8: #{basenet_volleyball_forward.2} parent=1 // loop_exit
      _

// kernel: basenet_volleyball_forward.3
$region0: #{basenet_volleyball_forward.3}
  #allocation0 [shape = 'u32[]', space=smem, size = 0x4, offset = 0x4, fixed_abs, tag = 'smem constant byte address 0x4 - core index']
  #allocation1 [shape = 'u32[72,128]{1,0:T(1,128)}', space=vmem, size = 0x9000, scoped, tag = 'internal scratch']
  %s0 = inlined_call_operand.vmem [shape: bf16[2,3,4,200], index: 0, kind: input, shape index: {}]
  %s1 = inlined_call_operand.vmem [shape: bf16[200,128], index: 1, kind: input, shape index: {}]
  %s2 = inlined_call_operand.vmem [shape: f32[1,128], index: 2, kind: input, shape index: {}]
  %s3 = inlined_call_operand.vmem [shape: f32[128,9], index: 3, kind: input, shape index: {}]
  %s4 = inlined_call_operand.vmem [shape: f32[1,9], index: 4, kind: input, shape index: {}]
  %s5 = inlined_call_operand.vmem [shape: f32[128,8], index: 5, kind: input, shape index: {}]
  %s6 = inlined_call_operand.vmem [shape: f32[1,8], index: 6, kind: input, shape index: {}]
  %s7 = inlined_call_operand.hbm [shape: f32[2,4,9], index: 7, kind: output, shape index: {0}]
  %s8 = inlined_call_operand.hbm [shape: f32[2,1,8], index: 8, kind: output, shape index: {1}]
  %9 = xla_tuple %s7, %s8
  %s10 = sld [smem:[#allocation0]]
  $region69: #{basenet_volleyball_forward.3} parent=0
    _
  %s12 = ssub.s32 1, %s10
  %s13 = scalar_select 0, %s12, %s10
  $region1: #{basenet_volleyball_forward.3} parent=0
    #allocation2 [shape = 'u8[4096]{0}', space=vmem, size = 0x1000, scoped, tag = 'output window, operand 0']
    #allocation3 [shape = 's32[2]{0}', space=sflag, size = 0x8, scoped, tag = 'scoped memory for basenet_volleyball_forward.3']
    #allocation4 [shape = 'u8[1024]{0}', space=vmem, size = 0x400, scoped, tag = 'output window, operand 1']
    #allocation5 [shape = 's32[2]{0}', space=sflag, size = 0x8, scoped, tag = 'scoped memory for basenet_volleyball_forward.3']
    %14 = vsyncpa [#allocation3], 0
    %s15 = scalar_lea.sflag [#allocation3], 1
    %16 = vsyncpa %s15, 0
    %17 = vsyncpa [#allocation5], 0
    %s18 = scalar_lea.sflag [#allocation5], 1
    %19 = vsyncpa %s18, 0
    loop: start=0, step=1, limit=4
    $region2: #{basenet_volleyball_forward.3} parent=1 // loop_pre_header
      _
    $region3: #{basenet_volleyball_forward.3} parent=1 // loop_header
      %s21 = sphi 0, %s25
      %p22 = scmp.ge.s32.totalorder %s21, 4
      %s31 = sphi 0, %s33
      %s34 = sphi 0, %s31
      %s35 = sphi 0, %s34
      %s51 = sphi 0, %s35
      %s55 = sphi 0, %s55
      %s57 = sphi 0, %s55
      %s58 = sphi 0, %s57
      %s72 = sphi 0, %s58
      %s76 = sphi 0, %s76
      %s78 = sphi 0, %s76
      %s79 = sphi 0, %s78
      %s93 = sphi 0, %s79
      %s97 = sphi 0, %s97
      %s99 = sphi 0, %s97
      %s100 = sphi 0, %s99
      %s114 = sphi 0, %s100
      %s118 = sphi 0, %s118
      %s120 = sphi 0, %s118
      %s121 = sphi 0, %s120
      %s135 = sphi 0, %s121
      %s139 = sphi 0, %s139
      %s141 = sphi 0, %s139
      %s142 = sphi 0, %s141
      %s156 = sphi 0, %s142
      %s160 = sphi 0, %s160
      %s162 = sphi 0, %s160
      %s163 = sphi 0, %s162
      %s177 = sphi 0, %s163
      %s183 = sphi 0, %s185
      %s186 = sphi 0, %s183
      %s187 = sphi 0, %s186
      %s203 = sphi 0, %s187
      %s209 = sphi 0, %s211
      %s212 = sphi 0, %s209
      %s213 = sphi 0, %s212
      %s229 = sphi 0, %s213
    $region4: #{basenet_volleyball_forward.3} parent=1 // loop_header_branch
      %24 = sbr.rel (%p22) target = $region8
    $region5: #{basenet_volleyball_forward.3} parent=1 // loop_body
      %s26 = ssub.s32 %s21, 1
      %s27 = ssub.s32 %s21, 2
      %s28 = sadd.s32 %s21, 1
      %s29 = ssub.s32 %s21, %s28
      %p30 = scmp.eq.s32.totalorder %s29, 0
      %s32 = sadd.s32 %s31, 1
      %s33 = scalar_select %p30, %s31, %s32
      %p36 = pneg %p30
      %p37 = scmp.eq.s32.totalorder %s21, 1
      %p38 = por %p36, %p37
      %p39 = scmp.ne.s32.totalorder %s31, %s34
      %p40 = scmp.eq.s32.totalorder %s21, 0
      %p41 = por %p39, %p40
      %p42 = scmp.ne.s32.totalorder %s31, %s34
      %p43 = scmp.eq.s32.totalorder %s26, 1
      %p44 = por %p42, %p43
      %p45 = scmp.ne.s32.totalorder %s34, %s35
      %p46 = scmp.eq.s32.totalorder %s26, 0
      %p47 = por %p45, %p46
      %p48 = scmp.ne.s32.totalorder %s34, %s35
      %p49 = scmp.eq.s32.totalorder %s27, 1
      %p50 = por %p48, %p49
      %p52 = scmp.ne.s32.totalorder %s35, %s51
      %p53 = scmp.eq.s32.totalorder %s27, 0
      %p54 = por %p52, %p53
      %s56 = sadd.s32 %s55, 1
      %p59 = scmp.eq.s32.totalorder %s21, 1
      %p60 = scmp.ne.s32.totalorder %s55, %s57
      %p61 = scmp.eq.s32.totalorder %s21, 0
      %p62 = por %p60, %p61
      %p63 = scmp.ne.s32.totalorder %s55, %s57
      %p64 = scmp.eq.s32.totalorder %s26, 1
      %p65 = por %p63, %p64
      %p66 = scmp.ne.s32.totalorder %s57, %s58
      %p67 = scmp.eq.s32.totalorder %s26, 0
      %p68 = por %p66, %p67
      %p69 = scmp.ne.s32.totalorder %s57, %s58
      %p70 = scmp.eq.s32.totalorder %s27, 1
      %p71 = por %p69, %p70
      %p73 = scmp.ne.s32.totalorder %s58, %s72
      %p74 = scmp.eq.s32.totalorder %s27, 0
      %p75 = por %p73, %p74
      %s77 = sadd.s32 %s76, 1
      %p80 = scmp.eq.s32.totalorder %s21, 1
      %p81 = scmp.ne.s32.totalorder %s76, %s78
      %p82 = scmp.eq.s32.totalorder %s21, 0
      %p83 = por %p81, %p82
      %p84 = scmp.ne.s32.totalorder %s76, %s78
      %p85 = scmp.eq.s32.totalorder %s26, 1
      %p86 = por %p84, %p85
      %p87 = scmp.ne.s32.totalorder %s78, %s79
      %p88 = scmp.eq.s32.totalorder %s26, 0
      %p89 = por %p87, %p88
      %p90 = scmp.ne.s32.totalorder %s78, %s79
      %p91 = scmp.eq.s32.totalorder %s27, 1
      %p92 = por %p90, %p91
      %p94 = scmp.ne.s32.totalorder %s79, %s93
      %p95 = scmp.eq.s32.totalorder %s27, 0
      %p96 = por %p94, %p95
      %s98 = sadd.s32 %s97, 1
      %p101 = scmp.eq.s32.totalorder %s21, 1
      %p102 = scmp.ne.s32.totalorder %s97, %s99
      %p103 = scmp.eq.s32.totalorder %s21, 0
      %p104 = por %p102, %p103
      %p105 = scmp.ne.s32.totalorder %s97, %s99
      %p106 = scmp.eq.s32.totalorder %s26, 1
      %p107 = por %p105, %p106
      %p108 = scmp.ne.s32.totalorder %s99, %s100
      %p109 = scmp.eq.s32.totalorder %s26, 0
      %p110 = por %p108, %p109
      %p111 = scmp.ne.s32.totalorder %s99, %s100
      %p112 = scmp.eq.s32.totalorder %s27, 1
      %p113 = por %p111, %p112
      %p115 = scmp.ne.s32.totalorder %s100, %s114
      %p116 = scmp.eq.s32.totalorder %s27, 0
      %p117 = por %p115, %p116
      %s119 = sadd.s32 %s118, 1
      %p122 = scmp.eq.s32.totalorder %s21, 1
      %p123 = scmp.ne.s32.totalorder %s118, %s120
      %p124 = scmp.eq.s32.totalorder %s21, 0
      %p125 = por %p123, %p124
      %p126 = scmp.ne.s32.totalorder %s118, %s120
      %p127 = scmp.eq.s32.totalorder %s26, 1
      %p128 = por %p126, %p127
      %p129 = scmp.ne.s32.totalorder %s120, %s121
      %p130 = scmp.eq.s32.totalorder %s26, 0
      %p131 = por %p129, %p130
      %p132 = scmp.ne.s32.totalorder %s120, %s121
      %p133 = scmp.eq.s32.totalorder %s27, 1
      %p134 = por %p132, %p133
      %p136 = scmp.ne.s32.totalorder %s121, %s135
      %p137 = scmp.eq.s32.totalorder %s27, 0
      %p138 = por %p136, %p137
      %s140 = sadd.s32 %s139, 1
      %p143 = scmp.eq.s32.totalorder %s21, 1
      %p144 = scmp.ne.s32.totalorder %s139, %s141
      %p145 = scmp.eq.s32.totalorder %s21, 0
      %p146 = por %p144, %p145
      %p147 = scmp.ne.s32.totalorder %s139, %s141
      %p148 = scmp.eq.s32.totalorder %s26, 1
      %p149 = por %p147, %p148
      %p150 = scmp.ne.s32.totalorder %s141, %s142
      %p151 = scmp.eq.s32.totalorder %s26, 0
      %p152 = por %p150, %p151
      %p153 = scmp.ne.s32.totalorder %s141, %s142
      %p154 = scmp.eq.s32.totalorder %s27, 1
      %p155 = por %p153, %p154
      %p157 = scmp.ne.s32.totalorder %s142, %s156
      %p158 = scmp.eq.s32.totalorder %s27, 0
      %p159 = por %p157, %p158
      %s161 = sadd.s32 %s160, 1
      %p164 = scmp.eq.s32.totalorder %s21, 1
      %p165 = scmp.ne.s32.totalorder %s160, %s162
      %p166 = scmp.eq.s32.totalorder %s21, 0
      %p167 = por %p165, %p166
      %p168 = scmp.ne.s32.totalorder %s160, %s162
      %p169 = scmp.eq.s32.totalorder %s26, 1
      %p170 = por %p168, %p169
      %p171 = scmp.ne.s32.totalorder %s162, %s163
      %p172 = scmp.eq.s32.totalorder %s26, 0
      %p173 = por %p171, %p172
      %p174 = scmp.ne.s32.totalorder %s162, %s163
      %p175 = scmp.eq.s32.totalorder %s27, 1
      %p176 = por %p174, %p175
      %p178 = scmp.ne.s32.totalorder %s163, %s177
      %p179 = scmp.eq.s32.totalorder %s27, 0
      %p180 = por %p178, %p179
      %s181 = ssub.s32 %s21, %s28
      %p182 = scmp.eq.s32.totalorder %s181, 0
      %s184 = sadd.s32 %s183, 1
      %s185 = scalar_select %p182, %s183, %s184
      %p188 = pneg %p182
      %p189 = scmp.eq.s32.totalorder %s21, 1
      %p190 = por %p188, %p189
      %p191 = scmp.ne.s32.totalorder %s183, %s186
      %p192 = scmp.eq.s32.totalorder %s21, 0
      %p193 = por %p191, %p192
      %p194 = scmp.ne.s32.totalorder %s183, %s186
      %p195 = scmp.eq.s32.totalorder %s26, 1
      %p196 = por %p194, %p195
      %p197 = scmp.ne.s32.totalorder %s186, %s187
      %p198 = scmp.eq.s32.totalorder %s26, 0
      %p199 = por %p197, %p198
      %p200 = scmp.ne.s32.totalorder %s186, %s187
      %p201 = scmp.eq.s32.totalorder %s27, 1
      %p202 = por %p200, %p201
      %p204 = scmp.ne.s32.totalorder %s187, %s203
      %p205 = scmp.eq.s32.totalorder %s27, 0
      %p206 = por %p204, %p205
      %s207 = ssub.s32 %s21, %s28
      %p208 = scmp.eq.s32.totalorder %s207, 0
      %s210 = sadd.s32 %s209, 1
      %s211 = scalar_select %p208, %s209, %s210
      %p214 = pneg %p208
      %p215 = scmp.eq.s32.totalorder %s21, 1
      %p216 = por %p214, %p215
      %p217 = scmp.ne.s32.totalorder %s209, %s212
      %p218 = scmp.eq.s32.totalorder %s21, 0
      %p219 = por %p217, %p218
      %p220 = scmp.ne.s32.totalorder %s209, %s212
      %p221 = scmp.eq.s32.totalorder %s26, 1
      %p222 = por %p220, %p221
      %p223 = scmp.ne.s32.totalorder %s212, %s213
      %p224 = scmp.eq.s32.totalorder %s26, 0
      %p225 = por %p223, %p224
      %p226 = scmp.ne.s32.totalorder %s212, %s213
      %p227 = scmp.eq.s32.totalorder %s27, 1
      %p228 = por %p226, %p227
      %p230 = scmp.ne.s32.totalorder %s213, %s229
      %p231 = scmp.eq.s32.totalorder %s27, 0
      %p232 = por %p230, %p231
      %p233 = scmp.le.s32.totalorder 1, %s21
      %p234 = scmp.lt.s32.totalorder %s21, 3
      %p235 = pnand %p233, %p234
      %p236 = pneg %p235
      // Predicated region
      $region9: #{basenet_volleyball_forward.3} parent=5 // pred_check
        _
      $region10: #{basenet_volleyball_forward.3} parent=5 // pred_check_branch
        %238 = sbr.rel (%p235) target = $region12
      $region11: #{basenet_volleyball_forward.3} parent=5 // pred_region
        %s239 = ssub.s32 %s21, 1
        // Predicated region
        $region13: #{basenet_volleyball_forward.3} parent=11 // pred_check
          %p240 = pneg %p68
        $region14: #{basenet_volleyball_forward.3} parent=11 // pred_check_branch
          %242 = sbr.rel (%p240) target = $region16
        $region15: #{basenet_volleyball_forward.3} parent=11 // pred_region
          _
        $region16: #{basenet_volleyball_forward.3} parent=11 // pred_fallthru
          _
        // Predicated region
        $region17: #{basenet_volleyball_forward.3} parent=11 // pred_check
          %p243 = pneg %p89
        $region18: #{basenet_volleyball_forward.3} parent=11 // pred_check_branch
          %245 = sbr.rel (%p243) target = $region20
        $region19: #{basenet_volleyball_forward.3} parent=11 // pred_region
          _
        $region20: #{basenet_volleyball_forward.3} parent=11 // pred_fallthru
          _
        // Predicated region
        $region21: #{basenet_volleyball_forward.3} parent=11 // pred_check
          %p246 = pneg %p110
        $region22: #{basenet_volleyball_forward.3} parent=11 // pred_check_branch
          %248 = sbr.rel (%p246) target = $region24
        $region23: #{basenet_volleyball_forward.3} parent=11 // pred_region
          _
        $region24: #{basenet_volleyball_forward.3} parent=11 // pred_fallthru
          _
        // Predicated region
        $region25: #{basenet_volleyball_forward.3} parent=11 // pred_check
          %p249 = pneg %p131
        $region26: #{basenet_volleyball_forward.3} parent=11 // pred_check_branch
          %251 = sbr.rel (%p249) target = $region28
        $region27: #{basenet_volleyball_forward.3} parent=11 // pred_region
          _
        $region28: #{basenet_volleyball_forward.3} parent=11 // pred_fallthru
          _
        // Predicated region
        $region29: #{basenet_volleyball_forward.3} parent=11 // pred_check
          %p252 = pneg %p152
        $region30: #{basenet_volleyball_forward.3} parent=11 // pred_check_branch
          %254 = sbr.rel (%p252) target = $region32
        $region31: #{basenet_volleyball_forward.3} parent=11 // pred_region
          _
        $region32: #{basenet_volleyball_forward.3} parent=11 // pred_fallthru
          _
        // Predicated region
        $region33: #{basenet_volleyball_forward.3} parent=11 // pred_check
          %p255 = pneg %p173
        $region34: #{basenet_volleyball_forward.3} parent=11 // pred_check_branch
          %257 = sbr.rel (%p255) target = $region36
        $region35: #{basenet_volleyball_forward.3} parent=11 // pred_region
          _
        $region36: #{basenet_volleyball_forward.3} parent=11 // pred_fallthru
          _
      $region12: #{basenet_volleyball_forward.3} parent=5 // pred_fallthru
        _
      %p258 = scmp.lt.s32.totalorder %s21, 2
      // Predicated region
      $region37: #{basenet_volleyball_forward.3} parent=5 // pred_check
        %p259 = pneg %p258
      $region38: #{basenet_volleyball_forward.3} parent=5 // pred_check_branch
        %261 = sbr.rel (%p259) target = $region40
      $region39: #{basenet_volleyball_forward.3} parent=5 // pred_region
        // Predicated region
        $region41: #{basenet_volleyball_forward.3} parent=39 // pred_check
          %p262 = pneg %p41
        $region42: #{basenet_volleyball_forward.3} parent=39 // pred_check_branch
          %264 = sbr.rel (%p262) target = $region44
        $region43: #{basenet_volleyball_forward.3} parent=39 // pred_region
          %p265 = scmp.lt.s32.totalorder %s21, 1
          %s266 = scalar_select %p265, %s21, 1
          %s267 = smul.addr %s266, 6
          %s268 = smul.addr %s267, 2
          %s269 = scalar_lea.vmem %s0, %s268
        $region44: #{basenet_volleyball_forward.3} parent=39 // pred_fallthru
          _
      $region40: #{basenet_volleyball_forward.3} parent=5 // pred_fallthru
        _
      %p270 = scmp.le.s32.totalorder 1, %s21
      %p271 = scmp.lt.s32.totalorder %s21, 3
      %p272 = pnand %p270, %p271
      %p273 = pneg %p272
      // Predicated region
      $region45: #{basenet_volleyball_forward.3} parent=5 // pred_check
        _
      $region46: #{basenet_volleyball_forward.3} parent=5 // pred_check_branch
        %275 = sbr.rel (%p272) target = $region48
      $region47: #{basenet_volleyball_forward.3} parent=5 // pred_region
        %s276 = ssub.s32 %s21, 1
        %p277 = scmp.lt.s32.totalorder %s26, 1
        %s278 = scalar_select %p277, %s26, 1
        %s279 = smul.addr %s278, 6
        %s280 = smul.addr %s279, 2
        %s281 = scalar_lea.vmem %s0, %s280
        %p282 = pneg %p47
        %p283 = pneg %p44
        %p284 = pneg %p68
        %p285 = pneg %p65
        %p286 = pneg %p89
        %p287 = pneg %p86
        %p288 = pneg %p110
        %p289 = pneg %p107
        %p290 = pneg %p131
        %p291 = pneg %p128
        %p292 = pneg %p152
        %p293 = pneg %p149
        %p294 = pneg %p173
        %p295 = pneg %p170
        %p296 = pneg %p199
        %p297 = pneg %p196
        %s298 = sand.u32 %s186, 1
        %s299 = scalar_lea.sflag [#allocation3], %s298
        %s300 = sand.u32 %s186, 1
        %s301 = smul.addr %s300, 4
        %s302 = scalar_lea.vmem [#allocation2], %s301
        %p303 = pneg %p225
        %p304 = pneg %p222
        %s305 = sand.u32 %s212, 1
        %s306 = scalar_lea.sflag [#allocation5], %s305
        %s307 = sand.u32 %s212, 1
        %s308 = scalar_lea.vmem [#allocation4], %s307
        %p309 = scmp.lt.s32.totalorder %s26, 1
        %s310 = scalar_select %p309, %s26, 1
        %s311 = smul.addr %s310, 6
        %s312 = smul.addr %s311, 2
        %s313 = scalar_lea.vmem %s0, %s312
        %v315 = vld [vmem:[%s1] sm:$0xf]
        %v316 = vld [vmem:[%s1 + $0x4] sm:$0xf]
        %v317 = vld [vmem:[%s1 + $0x8] sm:$0xf]
        %v318 = vld [vmem:[%s1 + $0xc] sm:$0xf]
        %v319 = vld [vmem:[%s1 + $0x10] sm:$0xf]
        %v320 = vld [vmem:[%s1 + $0x14] sm:$0xf]
        %v321 = vld [vmem:[%s1 + $0x18] sm:$0xf]
        %v322 = vld [vmem:[%s1 + $0x1c] sm:$0xf]
        %v323 = vld [vmem:[%s1 + $0x20] sm:$0xf]
        %v324 = vld [vmem:[%s1 + $0x24] sm:$0xf]
        %v325 = vld [vmem:[%s1 + $0x28] sm:$0xf]
        %v326 = vld [vmem:[%s1 + $0x2c] sm:$0xf]
        %v327 = vld [vmem:[%s1 + $0x30] sm:$0xf]
        %v328 = vld [vmem:[%s1 + $0x34] sm:$0xf]
        %v329 = vld [vmem:[%s1 + $0x38] sm:$0xf]
        %v330 = vld [vmem:[%s1 + $0x3c] sm:$0xf]
        %v331 = vld [vmem:[%s1 + $0x40] sm:$0xf]
        %v332 = vld [vmem:[%s1 + $0x44] sm:$0xf]
        %v333 = vld [vmem:[%s1 + $0x48] sm:$0xf]
        %v334 = vld [vmem:[%s1 + $0x4c] sm:$0xf]
        %v335 = vld [vmem:[%s1 + $0x50] sm:$0xf]
        %v336 = vld [vmem:[%s1 + $0x54] sm:$0xf]
        %v337 = vld [vmem:[%s1 + $0x58] sm:$0xf]
        %v338 = vld [vmem:[%s1 + $0x5c] sm:$0xf]
        %v339 = vld [vmem:[%s1 + $0x60] sm:$0xf]
        %v340 = vld [vmem:[%s2] sm:$0x1]
        %v341 = vld [vmem:[%s313] sm:$0xf]
        %v343 = vperm.slane %v340, 0
        %346 = vst [vmem:[#allocation1] ss:$4 sm:$0xff] %v341
        %v347 = vld.sshfl [vmem:[#allocation1] sm:$0xff pattern:$0x73625140]
        %v348 = vld.sshfl [vmem:[#allocation1 + $0x8] sm:$0xff pattern:$0x73625140]
        %v375 = vunpack.c.l.b16 %v315
        %v376 = vunpack.c.l.b16 %v316
        %v377 = vunpack.c.l.b16 %v317
        %v378 = vunpack.c.l.b16 %v318
        %v379 = vunpack.c.l.b16 %v319
        %v380 = vunpack.c.l.b16 %v320
        %v381 = vunpack.c.l.b16 %v321
        %v382 = vunpack.c.l.b16 %v322
        %v383 = vunpack.c.l.b16 %v323
        %v384 = vunpack.c.l.b16 %v324
        %v385 = vunpack.c.l.b16 %v325
        %v386 = vunpack.c.l.b16 %v326
        %v387 = vunpack.c.l.b16 %v327
        %v388 = vunpack.c.l.b16 %v328
        %v389 = vunpack.c.l.b16 %v329
        %v390 = vunpack.c.l.b16 %v330
        %v391 = vunpack.c.l.b16 %v331
        %v392 = vunpack.c.l.b16 %v332
        %v393 = vunpack.c.l.b16 %v333
        %v394 = vunpack.c.l.b16 %v334
        %v395 = vunpack.c.l.b16 %v335
        %v396 = vunpack.c.l.b16 %v336
        %v397 = vunpack.c.l.b16 %v337
        %v398 = vunpack.c.l.b16 %v338
        %v399 = vunpack.c.l.b16 %v339
        %v400 = vpack.c.b16 %v376, %v375
        %v401 = vpack.c.b16 %v378, %v377
        %v402 = vpack.c.b16 %v380, %v379
        %v403 = vpack.c.b16 %v382, %v381
        %v404 = vpack.c.b16 %v384, %v383
        %v405 = vpack.c.b16 %v386, %v385
        %v406 = vpack.c.b16 %v388, %v387
        %v407 = vpack.c.b16 %v390, %v389
        %v408 = vpack.c.b16 %v392, %v391
        %v409 = vpack.c.b16 %v394, %v393
        %v410 = vpack.c.b16 %v396, %v395
        %v411 = vpack.c.b16 %v398, %v397
        %v412 = vpack.c.b16 %v399, %v399
        %vm425 = vcmask 588800
        %v426 = vsel %vm425, %v348, 0
        %vm428 = vcmask 1043456
        %v430 = vsel %vm428, %v412, 0
        %432 = vmatpush.bf16.msra.mxu0 %v407
        %433 = vmatpush.bf16.msra.mxu0 %v406
        %434 = vmatpush.bf16.msra.mxu0 %v405
        %435 = vmatpush.bf16.msra.mxu0 %v404
        %436 = vmatpush.bf16.msra.mxu0 %v403
        %437 = vmatpush.bf16.msra.mxu0 %v402
        %438 = vmatpush.bf16.msra.mxu0 %v401
        %439 = vmatpush.bf16.msra.mxu0 %v400
        %440 = vmatmul.bf16.gmra.mxu0 %v347
        %v441 = vpop.f32.mrf.mxu0
        %v442 = vadd.f32 %v343, %v441
        %v443 = vpop.f32.mrf.mxu0
        %444 = vdwg.mxu0
        %445 = vmatpush.bf16.msra.mxu0 0
        %446 = vmatpush.bf16.msra.mxu0 0
        %447 = vmatpush.bf16.msra.mxu0 0
        %448 = vmatpush.bf16.msra.mxu0 %v430
        %449 = vmatpush.bf16.msra.mxu0 %v411
        %450 = vmatpush.bf16.msra.mxu0 %v410
        %451 = vmatpush.bf16.msra.mxu0 %v409
        %452 = vmatpush.bf16.msra.mxu0 %v408
        %453 = vmatmul.bf16.gmra.mxu0 %v426
        %v454 = vpop.f32.mrf.mxu0
        %v455 = vadd.f32 %v442, %v454
        %v456 = vpop.f32.mrf.mxu0
        %457 = vdwg.mxu0
        %v458 = vmax.f32 %v455, 0.0
        %v459 = vsel %vm428, %v458, -inf
        %v460 = vrot.slane %v459, 4
        %v461 = vmax.f32 %v459, %v460
        %v462 = vrot.slane %v461, 2
        %v463 = vmax.f32 %v461, %v462
        %v464 = vrot.slane %v463, 1
        %v465 = vmax.f32 %v463, %v464
        %s466 = scalar_lea.vmem %s313, 4
        %v467 = vld [vmem:[%s466] sm:$0xf]
        %469 = vst [vmem:[#allocation1] ss:$4 sm:$0xff] %v467
        %v470 = vld.sshfl [vmem:[#allocation1] sm:$0xff pattern:$0x73625140]
        %v471 = vld.sshfl [vmem:[#allocation1 + $0x8] sm:$0xff pattern:$0x73625140]
        %v473 = vsel %vm425, %v471, 0
        %475 = vmatpush.bf16.msra.mxu0 %v407
        %476 = vmatpush.bf16.msra.mxu0 %v406
        %477 = vmatpush.bf16.msra.mxu0 %v405
        %478 = vmatpush.bf16.msra.mxu0 %v404
        %479 = vmatpush.bf16.msra.mxu0 %v403
        %480 = vmatpush.bf16.msra.mxu0 %v402
        %481 = vmatpush.bf16.msra.mxu0 %v401
        %482 = vmatpush.bf16.msra.mxu0 %v400
        %483 = vmatmul.bf16.gmra.mxu0 %v470
        %v484 = vpop.f32.mrf.mxu0
        %v485 = vadd.f32 %v343, %v484
        %v486 = vpop.f32.mrf.mxu0
        %487 = vdwg.mxu0
        %488 = vmatpush.bf16.msra.mxu0 0
        %489 = vmatpush.bf16.msra.mxu0 0
        %490 = vmatpush.bf16.msra.mxu0 0
        %491 = vmatpush.bf16.msra.mxu0 %v430
        %492 = vmatpush.bf16.msra.mxu0 %v411
        %493 = vmatpush.bf16.msra.mxu0 %v410
        %494 = vmatpush.bf16.msra.mxu0 %v409
        %495 = vmatpush.bf16.msra.mxu0 %v408
        %496 = vmatmul.bf16.gmra.mxu0 %v473
        %v497 = vpop.f32.mrf.mxu0
        %v498 = vadd.f32 %v485, %v497
        %v499 = vpop.f32.mrf.mxu0
        %500 = vdwg.mxu0
        %v501 = vmax.f32 %v498, 0.0
        %v502 = vadd.f32 %v458, %v501
        %v503 = vsel %vm428, %v501, -inf
        %v504 = vrot.slane %v503, 4
        %v505 = vmax.f32 %v503, %v504
        %v506 = vrot.slane %v505, 2
        %v507 = vmax.f32 %v505, %v506
        %v508 = vrot.slane %v507, 1
        %v509 = vmax.f32 %v507, %v508
        %v510 = vadd.f32 %v465, %v509
        %s511 = scalar_lea.vmem %s313, 8
        %v512 = vld [vmem:[%s511] sm:$0xf]
        %514 = vst [vmem:[#allocation1] ss:$4 sm:$0xff] %v512
        %v515 = vld.sshfl [vmem:[#allocation1] sm:$0xff pattern:$0x73625140]
        %v516 = vld.sshfl [vmem:[#allocation1 + $0x8] sm:$0xff pattern:$0x73625140]
        %v518 = vsel %vm425, %v516, 0
        %520 = vmatpush.bf16.msra.mxu0 %v407
        %521 = vmatpush.bf16.msra.mxu0 %v406
        %522 = vmatpush.bf16.msra.mxu0 %v405
        %523 = vmatpush.bf16.msra.mxu0 %v404
        %524 = vmatpush.bf16.msra.mxu0 %v403
        %525 = vmatpush.bf16.msra.mxu0 %v402
        %526 = vmatpush.bf16.msra.mxu0 %v401
        %527 = vmatpush.bf16.msra.mxu0 %v400
        %528 = vmatmul.bf16.gmra.mxu0 %v515
        %v529 = vpop.f32.mrf.mxu0
        %v530 = vadd.f32 %v343, %v529
        %v531 = vpop.f32.mrf.mxu0
        %532 = vdwg.mxu0
        %533 = vmatpush.bf16.msra.mxu0 0
        %534 = vmatpush.bf16.msra.mxu0 0
        %535 = vmatpush.bf16.msra.mxu0 0
        %536 = vmatpush.bf16.msra.mxu0 %v430
        %537 = vmatpush.bf16.msra.mxu0 %v411
        %538 = vmatpush.bf16.msra.mxu0 %v410
        %539 = vmatpush.bf16.msra.mxu0 %v409
        %540 = vmatpush.bf16.msra.mxu0 %v408
        %541 = vmatmul.bf16.gmra.mxu0 %v518
        %v542 = vpop.f32.mrf.mxu0
        %v543 = vadd.f32 %v530, %v542
        %v544 = vpop.f32.mrf.mxu0
        %545 = vdwg.mxu0
        %v546 = vmax.f32 %v543, 0.0
        %v547 = vadd.f32 %v502, %v546
        %v548 = vsel %vm428, %v546, -inf
        %v549 = vrot.slane %v548, 4
        %v550 = vmax.f32 %v548, %v549
        %v551 = vrot.slane %v550, 2
        %v552 = vmax.f32 %v550, %v551
        %v553 = vrot.slane %v552, 1
        %v554 = vmax.f32 %v552, %v553
        %v555 = vadd.f32 %v510, %v554
        %v556 = vmul.f32 %v547, 0.33333334
        %v557 = vmul.f32 %v555, 0.33333334
        %v558 = vld [vmem:[%s3] sm:$0xff]
        %v559 = vld [vmem:[%s3 + $0x8] sm:$0xff]
        %v560 = vld [vmem:[%s3 + $0x10] sm:$0xff]
        %v561 = vld [vmem:[%s3 + $0x18] sm:$0xff]
        %v562 = vld [vmem:[%s3 + $0x20] sm:$0xff]
        %v563 = vld [vmem:[%s3 + $0x28] sm:$0xff]
        %v564 = vld [vmem:[%s3 + $0x30] sm:$0xff]
        %v565 = vld [vmem:[%s3 + $0x38] sm:$0xff]
        %v566 = vld [vmem:[%s3 + $0x40] sm:$0xff]
        %v567 = vld [vmem:[%s3 + $0x48] sm:$0xff]
        %v568 = vld [vmem:[%s3 + $0x50] sm:$0xff]
        %v569 = vld [vmem:[%s3 + $0x58] sm:$0xff]
        %v570 = vld [vmem:[%s3 + $0x60] sm:$0xff]
        %v571 = vld [vmem:[%s3 + $0x68] sm:$0xff]
        %v572 = vld [vmem:[%s3 + $0x70] sm:$0xff]
        %v573 = vld [vmem:[%s3 + $0x78] sm:$0xff]
        %v574 = vld [vmem:[%s4] sm:$0x1]
        %v576 = vperm.slane %v574, 0
        %578 = vmatpush.msra.mxu0 %v573
        %579 = vmatpush.msra.mxu0 %v572
        %580 = vmatpush.msra.mxu0 %v571
        %581 = vmatpush.msra.mxu0 %v570
        %582 = vmatpush.msra.mxu0 %v569
        %583 = vmatpush.msra.mxu0 %v568
        %584 = vmatpush.msra.mxu0 %v567
        %585 = vmatpush.msra.mxu0 %v566
        %586 = vmatpush.msra.mxu0 %v565
        %587 = vmatpush.msra.mxu0 %v564
        %588 = vmatpush.msra.mxu0 %v563
        %589 = vmatpush.msra.mxu0 %v562
        %590 = vmatpush.msra.mxu0 %v561
        %591 = vmatpush.msra.mxu0 %v560
        %592 = vmatpush.msra.mxu0 %v559
        %593 = vmatpush.msra.mxu0 %v558
        %594 = vmatmul.f32.gmra.mxu0 %v556
        %v595 = vpop.f32.mrf.mxu0
        %v596 = vadd.f32 %v576, %v595
        %597 = vdwg.mxu0
        %vm598 = vcmask 68608
        %599 = vst.msk [vmem:[%s302] sm:$0xf] %vm598, %v596
        %v600 = vld [vmem:[%s5] sm:$0xff]
        %v601 = vld [vmem:[%s5 + $0x8] sm:$0xff]
        %v602 = vld [vmem:[%s5 + $0x10] sm:$0xff]
        %v603 = vld [vmem:[%s5 + $0x18] sm:$0xff]
        %v604 = vld [vmem:[%s5 + $0x20] sm:$0xff]
        %v605 = vld [vmem:[%s5 + $0x28] sm:$0xff]
        %v606 = vld [vmem:[%s5 + $0x30] sm:$0xff]
        %v607 = vld [vmem:[%s5 + $0x38] sm:$0xff]
        %v608 = vld [vmem:[%s5 + $0x40] sm:$0xff]
        %v609 = vld [vmem:[%s5 + $0x48] sm:$0xff]
        %v610 = vld [vmem:[%s5 + $0x50] sm:$0xff]
        %v611 = vld [vmem:[%s5 + $0x58] sm:$0xff]
        %v612 = vld [vmem:[%s5 + $0x60] sm:$0xff]
        %v613 = vld [vmem:[%s5 + $0x68] sm:$0xff]
        %v614 = vld [vmem:[%s5 + $0x70] sm:$0xff]
        %v615 = vld [vmem:[%s5 + $0x78] sm:$0xff]
        %v616 = vld [vmem:[%s6] sm:$0x1]
        %617 = vmatpush.msra.mxu0 %v615
        %618 = vmatpush.msra.mxu0 %v614
        %619 = vmatpush.msra.mxu0 %v613
        %620 = vmatpush.msra.mxu0 %v612
        %621 = vmatpush.msra.mxu0 %v611
        %622 = vmatpush.msra.mxu0 %v610
        %623 = vmatpush.msra.mxu0 %v609
        %624 = vmatpush.msra.mxu0 %v608
        %625 = vmatpush.msra.mxu0 %v607
        %626 = vmatpush.msra.mxu0 %v606
        %627 = vmatpush.msra.mxu0 %v605
        %628 = vmatpush.msra.mxu0 %v604
        %629 = vmatpush.msra.mxu0 %v603
        %630 = vmatpush.msra.mxu0 %v602
        %631 = vmatpush.msra.mxu0 %v601
        %632 = vmatpush.msra.mxu0 %v600
        %633 = vmatmul.f32.gmra.mxu0 %v557
        %v634 = vpop.f32.mrf.mxu0
        %v635 = vadd.f32 %v616, %v634
        %636 = vdwg.mxu0
        %vm637 = vcmask 57344
        %638 = vst.msk [vmem:[%s308] sm:$0x1] %vm637, %v635
        %s639 = sand.u32 %s186, 1
        %s640 = scalar_lea.sflag [#allocation3], %s639
        %s641 = sand.u32 %s186, 1
        %s642 = smul.addr %s641, 4
        %s643 = scalar_lea.vmem [#allocation2], %s642
        %s644 = sand.u32 %s212, 1
        %s645 = scalar_lea.sflag [#allocation5], %s644
        %s646 = sand.u32 %s212, 1
        %s647 = scalar_lea.vmem [#allocation4], %s646
        // Predicated region
        $region49: #{basenet_volleyball_forward.3} parent=47 // pred_check
          %p648 = pneg %p196
        $region50: #{basenet_volleyball_forward.3} parent=47 // pred_check_branch
          %650 = sbr.rel (%p648) target = $region52
        $region51: #{basenet_volleyball_forward.3} parent=47 // pred_region
          %652 = vsyncadd %s640, 0
          %s653 = smul.addr %s26, 4
          %s654 = scalar_lea.hbm %s7, %s653
          %s656 = sshll.u32 %s643, 4
          %s657 = int_to_ptr.vmem [resolvable:$true] %s656
          %s658 = sshll.u32 %s654, 4
          %s659 = int_to_ptr.hbm [resolvable:$true] %s658
          %661 = dma.vmem_to_hbm [thread:$0]  %s657, 64, %s659, %s640
        $region52: #{basenet_volleyball_forward.3} parent=47 // pred_fallthru
          _
        // Predicated region
        $region53: #{basenet_volleyball_forward.3} parent=47 // pred_check
          %p662 = pneg %p222
        $region54: #{basenet_volleyball_forward.3} parent=47 // pred_check_branch
          %664 = sbr.rel (%p662) target = $region56
        $region55: #{basenet_volleyball_forward.3} parent=47 // pred_region
          %666 = vsyncadd %s645, 0
          %s667 = scalar_lea.hbm %s8, %s26
          %s669 = sshll.u32 %s647, 4
          %s670 = int_to_ptr.vmem [resolvable:$true] %s669
          %s671 = sshll.u32 %s667, 4
          %s672 = int_to_ptr.hbm [resolvable:$true] %s671
          %674 = dma.vmem_to_hbm [thread:$0]  %s670, 16, %s672, %s645
        $region56: #{basenet_volleyball_forward.3} parent=47 // pred_fallthru
          _
      $region48: #{basenet_volleyball_forward.3} parent=5 // pred_fallthru
        _
      %p675 = scmp.le.s32.totalorder 2, %s21
      // Predicated region
      $region57: #{basenet_volleyball_forward.3} parent=5 // pred_check
        %p676 = pneg %p675
      $region58: #{basenet_volleyball_forward.3} parent=5 // pred_check_branch
        %678 = sbr.rel (%p676) target = $region60
      $region59: #{basenet_volleyball_forward.3} parent=5 // pred_region
        %s679 = ssub.s32 %s21, 2
        // Predicated region
        $region61: #{basenet_volleyball_forward.3} parent=59 // pred_check
          %p680 = pneg %p202
        $region62: #{basenet_volleyball_forward.3} parent=59 // pred_check_branch
          %682 = sbr.rel (%p680) target = $region64
        $region63: #{basenet_volleyball_forward.3} parent=59 // pred_region
          %s683 = sand.u32 %s187, 1
          %s684 = scalar_lea.sflag [#allocation3], %s683
          %s685 = sand.u32 %s187, 1
          %s686 = smul.addr %s685, 4
          %s687 = scalar_lea.vmem [#allocation2], %s686
          %689 = dma.done %s684, 64
        $region64: #{basenet_volleyball_forward.3} parent=59 // pred_fallthru
          _
        // Predicated region
        $region65: #{basenet_volleyball_forward.3} parent=59 // pred_check
          %p690 = pneg %p228
        $region66: #{basenet_volleyball_forward.3} parent=59 // pred_check_branch
          %692 = sbr.rel (%p690) target = $region68
        $region67: #{basenet_volleyball_forward.3} parent=59 // pred_region
          %s693 = sand.u32 %s213, 1
          %s694 = scalar_lea.sflag [#allocation5], %s693
          %s695 = sand.u32 %s213, 1
          %s696 = scalar_lea.vmem [#allocation4], %s695
          %698 = dma.done %s694, 16
        $region68: #{basenet_volleyball_forward.3} parent=59 // pred_fallthru
          _
      $region60: #{basenet_volleyball_forward.3} parent=5 // pred_fallthru
        _
    $region6: #{basenet_volleyball_forward.3} parent=1 // loop_footer
      %s25 = sadd.s32 1, %s21
    $region7: #{basenet_volleyball_forward.3} parent=1 // loop_footer_branch
      %20 = sbr.rel target = $region3
    $region8: #{basenet_volleyball_forward.3} parent=1 // loop_exit
      _
    %699 = vsyncpa [#allocation3], 1
    %s700 = scalar_lea.sflag [#allocation3], 1
    %701 = vsyncpa %s700, 1
    %702 = vsyncpa [#allocation5], 1
    %s703 = scalar_lea.sflag [#allocation5], 1
    %704 = vsyncpa %s703, 1

</llo_original>
